<compile_context>
chip_gen: v6e
topology: v6e:2x2x1
jax: 0.10.0
libtpu: 0.0.40
codegen_flags: <defaults>
</compile_context>

<pallas_src>
import numpy as np
import jax
import jax.numpy as jnp
from jax import lax
from jax.experimental import pallas as pl
from jax.experimental.pallas import tpu as pltpu


def _round_up(x, m):
    return ((x + m - 1) // m) * m


def _default_vmem_limit_bytes():
    """~64 MiB on the 128-MiB-VMEM generations (v5e/v6e), ~30 MiB on v7x / unknown."""
    try:
        info = pltpu.get_tpu_info()
        cap = getattr(info, "vmem_capacity_bytes", None)
        if cap is not None and int(cap) >= 100 * (1 << 20):
            return 64 * (1 << 20)
    except Exception:
        pass
    return 30 * (1 << 20)


# -----------------------------------------------------------------------------
# Deterministic precomputation of quadrature + associated Legendre weights
# (plain numpy; mirrors the torch-harmonics helpers used by the module).
# -----------------------------------------------------------------------------
def lobatto_weights(n, a=-1.0, b=1.0, tol=1e-16, maxiter=100):
    tlg = np.zeros((n,), dtype=np.float64)
    vdm = np.zeros((n, n), dtype=np.float64)
    for i in range(n):
        tlg[i] = -np.cos(np.pi * i / (n - 1))
    for _ in range(maxiter):
        tmp = tlg.copy()
        vdm[:, 0] = 1.0
        vdm[:, 1] = tlg
        for k in range(2, n):
            vdm[:, k] = ((2 * k - 1) * tlg * vdm[:, k - 1] - (k - 1) * vdm[:, k - 2]) / k
        tlg = tmp - (tlg * vdm[:, n - 1] - vdm[:, n - 2]) / (n * vdm[:, n - 1])
        if np.max(np.abs(tlg - tmp)) < tol:
            break
    wlg = 2.0 / ((n * (n - 1)) * (vdm[:, n - 1] ** 2))
    wlg = wlg * (b - a) / 2
    tlg = (tlg + 1) * (b - a) / 2 + a
    return tlg, wlg


def _precompute_legpoly(mmax, lmax, t, norm="ortho", csphase=True):
    """Associated Legendre polynomials P_l^m(cos t), shape (mmax, lmax, len(t))."""
    x = np.cos(t)
    nmax = max(mmax, lmax)
    vdm = np.zeros((nmax, nmax, len(x)), dtype=np.float64)
    norm_factor = 1.0 if norm == "ortho" else np.sqrt(4 * np.pi)
    vdm[0, 0, :] = norm_factor / np.sqrt(4 * np.pi)
    for l in range(1, nmax):
        vdm[l - 1, l, :] = np.sqrt(2 * l + 1) * x * vdm[l - 1, l - 1, :]
        vdm[l, l, :] = np.sqrt((2 * l + 1) * (1 + x) * (1 - x) / 2 / l) * vdm[l - 1, l - 1, :]
    for l in range(2, nmax):
        for m in range(0, l - 1):
            vdm[m, l, :] = (
                x * np.sqrt((2 * l - 1) / (l - m) * (2 * l + 1) / (l + m)) * vdm[m, l - 1, :]
                - np.sqrt((l + m - 1) / (l - m) * (2 * l + 1) / (2 * l - 3) * (l - m - 1) / (l + m))
                * vdm[m, l - 2, :]
            )
    if norm == "schmidt":
        for l in range(0, nmax):
            vdm[:, l, :] = vdm[:, l, :] / np.sqrt(2 * l + 1)
    vdm = vdm[:mmax, :lmax]
    if csphase:
        for m in range(1, mmax, 2):
            vdm[m] *= -1
    return vdm


# -----------------------------------------------------------------------------
# Pallas kernels
# -----------------------------------------------------------------------------
def _dft_kernel(ft_ref, x_ref, out_ref):
    # ft_ref : (wc_tile, nlon)   interleaved [cos; -sin] DFT rows (row 2m = cos_m, 2m+1 = -sin_m)
    # x_ref  : (row_tile, nlon)  flattened (batch, nlat) fields
    # out    : (wc_tile, row_tile)  Fourier coefficients, m' major, rows on lanes (lane-dense)
    acc = lax.dot_general(ft_ref[...], x_ref[...],
                          dimension_numbers=(((1,), (1,)), ((), ())),
                          preferred_element_type=jnp.float32)
    out_ref[...] = acc.astype(out_ref.dtype)


def _legendre_kernel(xq_ref, w_ref, out_ref):
    # xq_ref : (m_tile, 2, b_tile, nlat_pad)  Fourier coefficients (m batch, re/im, fields, k)
    # w_ref  : (m_tile, l_tile, nlat_pad)     quadrature * Legendre weights
    # out    : (m_tile, 2, b_tile, l_tile)    lane-dense along the padded l axis
    m_tile, two, b_tile, k = xq_ref.shape
    l_tile = out_ref.shape[-1]
    # Merge real/imag into the matmul M dimension: b_tile % 8 == 0 so this reshape is a
    # tile-aligned no-op relayout.  ONE m-batched dot_general per block (M = 2*b_tile,
    # N = l_tile, K = nlat_pad) -> half the RHS weight pushes vs two separate dots.
    xq = xq_ref[...].reshape(m_tile, two * b_tile, k)
    dn = (((2,), (2,)), ((0,), (0,)))
    acc = lax.dot_general(xq, w_ref[...], dn, preferred_element_type=jnp.float32)
    out_ref[...] = acc.reshape(m_tile, two, b_tile, l_tile)


# -----------------------------------------------------------------------------
# Builder + wrapper
# -----------------------------------------------------------------------------
def make_real_sht(nlat, nlon, lmax=None, mmax=None, grid="lobatto", norm="ortho",
                  csphase=True, compute_dtype=jnp.float32,
                  l_tile=128, m_tile=8, b_tile_max=512, vmem_limit_bytes=None):
    """Returns (sht_fn, meta) where sht_fn(x) applies the forward real SHT."""
    if grid != "lobatto":
        raise NotImplementedError("only 'lobatto' (module default) implemented here")
    assert l_tile % 128 == 0 and m_tile % 8 == 0

    if vmem_limit_bytes is None:
        vmem_limit_bytes = _default_vmem_limit_bytes()
    itemsize = int(np.dtype(compute_dtype).itemsize)

    cost, wq = lobatto_weights(nlat, -1, 1)
    lmax = lmax or nlat - 1
    mmax = mmax or nlon // 2 + 1
    tq = np.flip(np.arccos(cost))
    pct = _precompute_legpoly(mmax, lmax, tq, norm=norm, csphase=csphase)    # (mmax, lmax, nlat)
    weights = pct * wq[None, None, :]                                         # (mmax, lmax, nlat)

    # Padded sizes: nlat -> sublane multiple of 8 (contraction dim, full extent in-block),
    # mmax -> multiple of m_tile (dot_general batch dim only), lmax -> multiple of 128
    # (lane dim of the stage-2 output => unmasked dense stores).
    nlat_pad = _round_up(nlat, 8)
    mmax_pad = _round_up(mmax, m_tile)
    lmax_pad = _round_up(lmax, l_tile)

    def _fits_stage1(wc, row):
        # double-buffered: Ft block + x block + out block
        return 2 * ((wc + row) * nlon + wc * row) * itemsize <= int(0.85 * vmem_limit_bytes)

    # Fused-DFT width tiling: prefer the full width (Ft and x then each make exactly one
    # HBM pass in stage 1); only tile the width if the Ft block alone would not fit VMEM.
    width = 2 * mmax_pad
    if _fits_stage1(width, 128):
        wc_tile = width
    else:
        mmax_pad = _round_up(mmax_pad, int(np.lcm(m_tile, 128)))
        width = 2 * mmax_pad
        wc_tile = 256   # corner case: x is re-read width/256 times in stage 1

    # Interleaved real-DFT matrix replacing 2*pi*rfft(norm='forward'), already transposed:
    #   row 2*m   : cos(2*pi*n*m/nlon) * 2*pi/nlon
    #   row 2*m+1 : -sin(2*pi*n*m/nlon) * 2*pi/nlon
    # so the stage-1 output (width, B_pad*nlat_pad) reshapes FOR FREE to
    # (mmax_pad, 2, B_pad, nlat_pad) -- exactly the stage-2 input layout (no XLA transpose).
    nn = np.arange(nlon)[None, :]
    mm = np.arange(mmax)[:, None]
    ang = 2.0 * np.pi * mm * nn / nlon
    scale = 2.0 * np.pi / nlon
    ft_np = np.zeros((width, nlon), dtype=np.float64)
    ft_np[0:2 * mmax:2, :] = np.cos(ang) * scale
    ft_np[1:2 * mmax:2, :] = -np.sin(ang) * scale

    # Legendre/quadrature weights in (m, l, k) layout, zero-padded.
    # TODO(synk): for compute_dtype=bfloat16, consider keeping w_leg in f32 (or a split-bf16
    # scheme) -- high-degree associated Legendre weights span a large dynamic range.
    w_np = np.zeros((mmax_pad, lmax_pad, nlat_pad), dtype=np.float64)
    w_np[:mmax, :lmax, :nlat] = weights

    ft_mat = jnp.asarray(ft_np, dtype=compute_dtype)
    w_leg = jnp.asarray(w_np, dtype=compute_dtype)

    @jax.jit
    def sht(x):
        assert x.shape[-2] == nlat and x.shape[-1] == nlon
        batch_shape = x.shape[:-2]
        B = int(np.prod(batch_shape)) if batch_shape else 1

        # -- batch tile: stage 2 is HBM-bound on the Legendre-weight stream (arithmetic
        #    intensity ~ b_tile FLOP/byte) -> largest b_tile that still double-buffers.
        #    b_tile is a multiple of 16 (bf16 (16,128) packed tile + makes rows % 128 == 0).
        b_cap = _round_up(min(b_tile_max, _round_up(B, 16)), 16)
        b_tile = 16
        for cand in sorted({512, 256, 128, 64, 32, 16, b_cap}, reverse=True):
            if cand > b_cap or cand % 16:
                continue
            xq_blk = m_tile * 2 * cand * nlat_pad * itemsize
            w_blk = m_tile * l_tile * nlat_pad * itemsize
            o_blk = m_tile * 2 * cand * l_tile * 4
            if 2 * (xq_blk + w_blk + o_blk) <= int(0.85 * vmem_limit_bytes):
                b_tile = cand
                break
        B_pad = _round_up(B, b_tile)

        # -- stage 0: pad + flatten (free reshapes) -------------------------------------
        xb = x.reshape(B, nlat, nlon).astype(compute_dtype)
        xb = jnp.pad(xb, ((0, B_pad - B), (0, nlat_pad - nlat), (0, 0)))
        rows = B_pad * nlat_pad                      # multiple of 128
        x2d = xb.reshape(rows, nlon)

        # -- stage-1 row tile: as large as VMEM allows (amortizes per-step overhead and
        #    pushes the DFT matmul toward the HBM roofline).
        row_tile = 128
        for cand in (2048, 1024, 512, 256, 128):
            if rows % cand:
                continue
            if _fits_stage1(wc_tile, cand):
                row_tile = cand
                break
        n_wc, n_rows = width // wc_tile, rows // row_tile

        # -- stage 1: fused real-DFT matmul on the MXU, transposed output ---------------
        # Ft has a constant block index along the inner (rows) axis -> DMA'd only once.
        xf = pl.pallas_call(
            _dft_kernel,
            out_shape=jax.ShapeDtypeStruct((width, rows), compute_dtype),
            grid=(n_wc, n_rows),
            in_specs=[
                pl.BlockSpec((wc_tile, nlon), lambda j, i: (j, 0)),
                pl.BlockSpec((row_tile, nlon), lambda j, i: (i, 0)),
            ],
            out_specs=pl.BlockSpec((wc_tile, row_tile), lambda j, i: (j, i)),
            compiler_params=pltpu.CompilerParams(
                dimension_semantics=("parallel", "parallel"),
                vmem_limit_bytes=vmem_limit_bytes),
            cost_estimate=pl.CostEstimate(
                flops=2 * width * rows * nlon,
                transcendentals=0,
                bytes_accessed=int(itemsize * (n_wc * rows * nlon      # x (re-read n_wc times)
                                               + width * nlon          # Ft once
                                               + width * rows))),      # out once
        )(ft_mat, x2d)

        # -- free view into the stage-2 layout (pure dimension splits, no data movement) --
        xq = xf.reshape(mmax_pad, 2, B_pad, nlat_pad)

        # -- stage 2: Legendre/quadrature contraction, m-batched merged-M MXU matmul ------
        n_b, n_m, n_l = B_pad // b_tile, mmax_pad // m_tile, lmax_pad // l_tile
        out_t = pl.pallas_call(
            _legendre_kernel,
            out_shape=jax.ShapeDtypeStruct((mmax_pad, 2, B_pad, lmax_pad), jnp.float32),
            # b outermost: the full weight slab is re-streamed only n_b times.
            # l innermost: the (large) xq block index is unchanged across the l sweep.
            grid=(n_b, n_m, n_l),
            in_specs=[
                pl.BlockSpec((m_tile, 2, b_tile, nlat_pad), lambda b, m, l: (m, 0, b, 0)),
                pl.BlockSpec((m_tile, l_tile, nlat_pad), lambda b, m, l: (m, l, 0)),
            ],
            out_specs=pl.BlockSpec((m_tile, 2, b_tile, l_tile),
                                   lambda b, m, l: (m, 0, b, l)),
            compiler_params=pltpu.CompilerParams(
                dimension_semantics=("parallel", "parallel", "parallel"),
                vmem_limit_bytes=vmem_limit_bytes),
            cost_estimate=pl.CostEstimate(
                flops=2 * mmax_pad * 2 * B_pad * lmax_pad * nlat_pad,
                transcendentals=0,
                bytes_accessed=int(itemsize * (2 * mmax_pad * B_pad * nlat_pad            # xq once
                                               + n_b * mmax_pad * lmax_pad * nlat_pad)    # W re-streamed
                                   + 4 * 2 * mmax_pad * B_pad * lmax_pad)),               # out once
        )(xq, w_leg)

        # -- epilogue: drop padding, put (l, m) minor, combine real/imag ------------------
        # One lane-crossing pass over the (complex-sized) output; writing m to lanes from
        # the kernel would force m_tile = mmax_pad and blow the stage-2 VMEM budget again,
        # so this single XLA pass is the accepted cost (review item audited).
        out = out_t[:mmax, :, :B, :lmax]                 # (mmax, 2, B, lmax)
        out = jnp.transpose(out, (2, 3, 0, 1))           # (B, lmax, mmax, 2)
        out_c = lax.complex(out[..., 0], out[..., 1])
        return out_c.reshape(*batch_shape, lmax, mmax)

    meta = dict(lmax=lmax, mmax=mmax, weights=np.asarray(weights, dtype=np.float32))
    return sht, meta


# -----------------------------------------------------------------------------
if __name__ == "__main__":
    nlat, nlon = 16, 32
    batch, chan = 2, 4

    sht, meta = make_real_sht(nlat, nlon)           # compute_dtype=f32 (strict self-test);
    lmax, mmax = meta["lmax"], meta["mmax"]         # pass compute_dtype=jnp.bfloat16 for v6e/v7x prod.

    key = jax.random.PRNGKey(0)
    x = jax.random.normal(key, (batch, chan, nlat, nlon), dtype=jnp.float32)

    out = jax.block_until_ready(sht(x))

    # Pure-JAX reference of the PyTorch forward.
    x_fft = jnp.fft.rfft(x, axis=-1) * (2.0 * np.pi / nlon)     # == 2*pi * rfft(norm='forward')
    x_fft = x_fft[..., :mmax]
    wmlk = jnp.asarray(meta["weights"])
    ref_r = jnp.einsum('...km,mlk->...lm', jnp.real(x_fft), wmlk)
    ref_i = jnp.einsum('...km,mlk->...lm', jnp.imag(x_fft), wmlk)

    assert out.shape == (batch, chan, lmax, mmax)
    assert out.dtype == jnp.complex64
    # Tolerance tightened ~5-10x vs the previous version so layout/padding regressions are
    # caught, while still allowing for the MXU's multi-pass f32 matmul rounding behaviour.
    np.testing.assert_allclose(np.real(np.asarray(out)), np.asarray(ref_r), rtol=2e-3, atol=2e-4)
    np.testing.assert_allclose(np.imag(np.asarray(out)), np.asarray(ref_i), rtol=2e-3, atol=2e-4)

    print("KERNEL_OK")
</pallas_src>

<mosaic_0001>
module attributes {stable_mosaic.version = 11 : i64} {
  func.func @_legendre_kernel(%arg0: i32, %arg1: i32, %arg2: i32, %arg3: memref<8x2x16x16xf32, #tpu.memory_space<vmem>>, %arg4: memref<8x128x16xf32, #tpu.memory_space<vmem>>, %arg5: memref<8x2x16x128xf32, #tpu.memory_space<vmem>>) attributes {dimension_semantics = [#tpu.dimension_semantics<parallel>, #tpu.dimension_semantics<parallel>, #tpu.dimension_semantics<parallel>], iteration_bounds = array<i64: 1, 3, 1>, scalar_prefetch = 0 : i64, scratch_operands = 0 : i64, tpu.core_type = #tpu.core_type<tc>, window_params = [{transform_indices = @transform_0, window_bounds = array<i64: 8, 2, 16, 16>}, {transform_indices = @transform_1, window_bounds = array<i64: 8, 128, 16>}, {transform_indices = @transform_2, window_bounds = array<i64: 8, 2, 16, 128>}]} {
    %c0 = arith.constant 0 : index
    %c0_0 = arith.constant 0 : index
    %c0_1 = arith.constant 0 : index
    %c0_2 = arith.constant 0 : index
    %0 = vector.load %arg3[%c0, %c0_0, %c0_1, %c0_2] : memref<8x2x16x16xf32, #tpu.memory_space<vmem>>, vector<8x2x16x16xf32>
    %1 = vector.shape_cast %0 : vector<8x2x16x16xf32> to vector<8x32x16xf32>
    %c0_3 = arith.constant 0 : index
    %c0_4 = arith.constant 0 : index
    %c0_5 = arith.constant 0 : index
    %2 = vector.load %arg4[%c0_3, %c0_4, %c0_5] : memref<8x128x16xf32, #tpu.memory_space<vmem>>, vector<8x128x16xf32>
    %cst = arith.constant dense<0.000000e+00> : vector<8x32x128xf32>
    %3 = tpu.matmul %1, %2, %cst {dimension_numbers = #tpu.dot_dimension_numbers<[2], [2], [1], [1], [0, 0, 0, 1, 1, 1], [0], [0]>} : vector<8x32x16xf32>, vector<8x128x16xf32>, vector<8x32x128xf32> -> vector<8x32x128xf32>
    %4 = vector.shape_cast %3 : vector<8x32x128xf32> to vector<8x2x16x128xf32>
    %c0_6 = arith.constant 0 : index
    %c0_7 = arith.constant 0 : index
    %c0_8 = arith.constant 0 : index
    %c0_9 = arith.constant 0 : index
    %5 = vector.load %arg5[%c0_6, %c0_7, %c0_8, %c0_9] : memref<8x2x16x128xf32, #tpu.memory_space<vmem>>, vector<8x2x16x128xf32>
    tpu.vector_store %arg5[%c0_6, %c0_7, %c0_8, %c0_9], %4 {strides = array<i32>} : memref<8x2x16x128xf32, #tpu.memory_space<vmem>>, vector<8x2x16x128xf32>,
    return
  }
  func.func @transform_0(%arg0: i32, %arg1: i32, %arg2: i32) -> (i32, i32, i32, i32) {
    %c0_i32 = arith.constant 0 : i32
    %c0_i32_0 = arith.constant 0 : i32
    %c0_i32_1 = arith.constant 0 : i32
    return %arg1, %c0_i32, %arg0, %c0_i32_0 : i32, i32, i32, i32
  }
  func.func @transform_1(%arg0: i32, %arg1: i32, %arg2: i32) -> (i32, i32, i32) {
    %c0_i32 = arith.constant 0 : i32
    %c0_i32_0 = arith.constant 0 : i32
    return %arg1, %arg2, %c0_i32 : i32, i32, i32
  }
  func.func @transform_2(%arg0: i32, %arg1: i32, %arg2: i32) -> (i32, i32, i32, i32) {
    %c0_i32 = arith.constant 0 : i32
    %c0_i32_0 = arith.constant 0 : i32
    return %arg1, %c0_i32, %arg0, %arg2 : i32, i32, i32, i32
  }
}

module attributes {stable_mosaic.version = 11 : i64} {
  func.func @_dft_kernel(%arg0: i32, %arg1: i32, %arg2: memref<48x32xf32, #tpu.memory_space<vmem>>, %arg3: memref<256x32xf32, #tpu.memory_space<vmem>>, %arg4: memref<48x256xf32, #tpu.memory_space<vmem>>) attributes {dimension_semantics = [#tpu.dimension_semantics<parallel>, #tpu.dimension_semantics<parallel>], iteration_bounds = array<i64: 1, 1>, scalar_prefetch = 0 : i64, scratch_operands = 0 : i64, tpu.core_type = #tpu.core_type<tc>, window_params = [{transform_indices = @transform_0, window_bounds = array<i64: 48, 32>}, {transform_indices = @transform_1, window_bounds = array<i64: 256, 32>}, {transform_indices = @transform_2, window_bounds = array<i64: 48, 256>}]} {
    %c0 = arith.constant 0 : index
    %c0_0 = arith.constant 0 : index
    %0 = vector.load %arg2[%c0, %c0_0] : memref<48x32xf32, #tpu.memory_space<vmem>>, vector<48x32xf32>
    %c0_1 = arith.constant 0 : index
    %c0_2 = arith.constant 0 : index
    %1 = vector.load %arg3[%c0_1, %c0_2] : memref<256x32xf32, #tpu.memory_space<vmem>>, vector<256x32xf32>
    %cst = arith.constant dense<0.000000e+00> : vector<48x256xf32>
    %2 = tpu.matmul %0, %1, %cst {dimension_numbers = #tpu.dot_dimension_numbers<[1], [1], [0], [0], [0, 0, 1, 0], [], []>} : vector<48x32xf32>, vector<256x32xf32>, vector<48x256xf32> -> vector<48x256xf32>
    %c0_3 = arith.constant 0 : index
    %c0_4 = arith.constant 0 : index
    %3 = vector.load %arg4[%c0_3, %c0_4] : memref<48x256xf32, #tpu.memory_space<vmem>>, vector<48x256xf32>
    tpu.vector_store %arg4[%c0_3, %c0_4], %2 {strides = array<i32>} : memref<48x256xf32, #tpu.memory_space<vmem>>, vector<48x256xf32>,
    return
  }
  func.func @transform_0(%arg0: i32, %arg1: i32) -> (i32, i32) {
    %c0_i32 = arith.constant 0 : i32
    %c0_i32_0 = arith.constant 0 : i32
    return %arg0, %c0_i32 : i32, i32
  }
  func.func @transform_1(%arg0: i32, %arg1: i32) -> (i32, i32) {
    %c0_i32 = arith.constant 0 : i32
    %c0_i32_0 = arith.constant 0 : i32
    return %arg1, %c0_i32 : i32, i32
  }
  func.func @transform_2(%arg0: i32, %arg1: i32) -> (i32, i32) {
    %c0_i32 = arith.constant 0 : i32
    return %arg0, %arg1 : i32, i32
  }
}

</mosaic_0001>

<llo_original>
// kernel: custom-call
$region0: #{custom-call}
  %s0 = inlined_call_operand.vmem [shape: f32[2,4,15,17], index: 0, kind: input, shape index: {}]
  %s1 = inlined_call_operand.vmem [shape: f32[2,4,15,17], index: 1, kind: input, shape index: {}]
  %s2 = inlined_call_operand.hbm [shape: c64[2,4,15,17], index: 2, kind: output, shape index: {}]
  %s3 = scalar_lea.hbm %s2, 1920
  $region1: #{custom-call} parent=0
    #allocation0 [shape = 's32[1]{0}', space=sflag, size = 0x4, scoped, tag = 'scoped memory for custom-call']
    %4 = vsyncpa [#allocation0], 0
    %s5 = sshll.u32 %s0, 4
    %s6 = int_to_ptr.vmem [resolvable:$true] %s5
    %8 = dma.vmem_to_hbm [thread:$0]  %s6, 1920, %s2, [#allocation0]
    %9 = dma.done [#allocation0], 1920
    %10 = vsyncpa [#allocation0], 1
  $region2: #{custom-call} parent=0
    #allocation1 [shape = 's32[1]{0}', space=sflag, size = 0x4, scoped, tag = 'scoped memory for custom-call']
    %11 = vsyncpa [#allocation1], 0
    %s12 = sshll.u32 %s1, 4
    %s13 = int_to_ptr.vmem [resolvable:$true] %s12
    %15 = dma.vmem_to_hbm [thread:$0]  %s13, 1920, %s3, [#allocation1]
    %16 = dma.done [#allocation1], 1920
    %17 = vsyncpa [#allocation1], 1

// kernel: sht.2
$region0: #{sht.2}
  #allocation0 [shape = 'u32[]', space=smem, size = 0x4, offset = 0x4, fixed_abs, tag = 'smem constant byte address 0x4 - core index']
  #allocation1 [shape = 'u32[144,128]{1,0:T(1,128)}', space=vmem, size = 0x12000, scoped, tag = 'internal scratch']
  %s0 = inlined_call_operand.hbm [shape: f32[48,32], index: 0, kind: input, shape index: {}]
  %s1 = inlined_call_operand.vmem [shape: f32[256,32], index: 1, kind: input, shape index: {}]
  %s2 = inlined_call_operand.vmem [shape: f32[48,256], index: 2, kind: output, shape index: {}]
  %s3 = sld [smem:[#allocation0]]
  $region22: #{sht.2} parent=0
    _
  %s5 = ssub.s32 1, %s3
  %s6 = scalar_select 0, %s5, %s3
  $region1: #{sht.2} parent=0
    #allocation2 [shape = 'u8[24576]{0}', space=vmem, size = 0x6000, scoped, tag = 'input window, operand 0, single buffered']
    #allocation3 [shape = 's32[1]{0}', space=sflag, size = 0x4, scoped, tag = 'scoped memory for sht.2']
    %7 = vsyncpa [#allocation3], 0
    // Predicated region
    $region2: #{sht.2} parent=1 // pred_check
      _
    $region3: #{sht.2} parent=1 // pred_check_branch
      %9 = sbr.rel (0) target = $region5
    $region4: #{sht.2} parent=1 // pred_region
      %s11 = ssub.s32 768, 768
      %12 = vsyncadd [#allocation3], %s11
      %s13 = sshll.u32 [#allocation2], 4
      %s14 = int_to_ptr.vmem [resolvable:$true] %s13
      %19 = dma.hbm_to_vmem [thread:$0]  %s0, 768, %s14, [#allocation3], 128, 128, 8
    $region5: #{sht.2} parent=1 // pred_fallthru
      _
    // Predicated region
    $region6: #{sht.2} parent=1 // pred_check
      _
    $region7: #{sht.2} parent=1 // pred_check_branch
      %21 = sbr.rel (0) target = $region9
    $region8: #{sht.2} parent=1 // pred_region
      _
    $region9: #{sht.2} parent=1 // pred_fallthru
      _
    // Predicated region
    $region10: #{sht.2} parent=1 // pred_check
      _
    $region11: #{sht.2} parent=1 // pred_check_branch
      %23 = sbr.rel (0) target = $region13
    $region12: #{sht.2} parent=1 // pred_region
      %24 = dma.done [#allocation3], 768
    $region13: #{sht.2} parent=1 // pred_fallthru
      _
    %v25 = vld [vmem:[#allocation2] sm:$0xff]
    %v26 = vld [vmem:[#allocation2 + $0x8] sm:$0xff]
    %v27 = vld [vmem:[#allocation2 + $0x10] sm:$0xff]
    %v28 = vld [vmem:[#allocation2 + $0x18] sm:$0xff]
    %v29 = vld [vmem:[#allocation2 + $0x20] sm:$0xff]
    %v30 = vld [vmem:[#allocation2 + $0x28] sm:$0xff]
    %v31 = vld [vmem:[%s1] sm:$0xff]
    %v32 = vld [vmem:[%s1 + $0x8] sm:$0xff]
    %v33 = vld [vmem:[%s1 + $0x10] sm:$0xff]
    %v34 = vld [vmem:[%s1 + $0x18] sm:$0xff]
    %v35 = vld [vmem:[%s1 + $0x20] sm:$0xff]
    %v36 = vld [vmem:[%s1 + $0x28] sm:$0xff]
    %v37 = vld [vmem:[%s1 + $0x30] sm:$0xff]
    %v38 = vld [vmem:[%s1 + $0x38] sm:$0xff]
    %v39 = vld [vmem:[%s1 + $0x40] sm:$0xff]
    %v40 = vld [vmem:[%s1 + $0x48] sm:$0xff]
    %v41 = vld [vmem:[%s1 + $0x50] sm:$0xff]
    %v42 = vld [vmem:[%s1 + $0x58] sm:$0xff]
    %v43 = vld [vmem:[%s1 + $0x60] sm:$0xff]
    %v44 = vld [vmem:[%s1 + $0x68] sm:$0xff]
    %v45 = vld [vmem:[%s1 + $0x70] sm:$0xff]
    %v46 = vld [vmem:[%s1 + $0x78] sm:$0xff]
    %v47 = vld [vmem:[%s1 + $0x80] sm:$0xff]
    %v48 = vld [vmem:[%s1 + $0x88] sm:$0xff]
    %v49 = vld [vmem:[%s1 + $0x90] sm:$0xff]
    %v50 = vld [vmem:[%s1 + $0x98] sm:$0xff]
    %v51 = vld [vmem:[%s1 + $0xa0] sm:$0xff]
    %v52 = vld [vmem:[%s1 + $0xa8] sm:$0xff]
    %v53 = vld [vmem:[%s1 + $0xb0] sm:$0xff]
    %v54 = vld [vmem:[%s1 + $0xb8] sm:$0xff]
    %v55 = vld [vmem:[%s1 + $0xc0] sm:$0xff]
    %v56 = vld [vmem:[%s1 + $0xc8] sm:$0xff]
    %v57 = vld [vmem:[%s1 + $0xd0] sm:$0xff]
    %v58 = vld [vmem:[%s1 + $0xd8] sm:$0xff]
    %v59 = vld [vmem:[%s1 + $0xe0] sm:$0xff]
    %v60 = vld [vmem:[%s1 + $0xe8] sm:$0xff]
    %v61 = vld [vmem:[%s1 + $0xf0] sm:$0xff]
    %v62 = vld [vmem:[%s1 + $0xf8] sm:$0xff]
    %vm63 = vcmask 261120
    %v65 = vsel %vm63, %v25, 0
    %v68 = vsel %vm63, %v26, 0
    %v71 = vsel %vm63, %v27, 0
    %v74 = vsel %vm63, %v28, 0
    %v77 = vsel %vm63, %v29, 0
    %v80 = vsel %vm63, %v30, 0
    %v83 = vsel %vm63, %v31, 0
    %v86 = vsel %vm63, %v32, 0
    %v89 = vsel %vm63, %v33, 0
    %v92 = vsel %vm63, %v34, 0
    %v95 = vsel %vm63, %v35, 0
    %v98 = vsel %vm63, %v36, 0
    %v101 = vsel %vm63, %v37, 0
    %v104 = vsel %vm63, %v38, 0
    %v107 = vsel %vm63, %v39, 0
    %v110 = vsel %vm63, %v40, 0
    %v113 = vsel %vm63, %v41, 0
    %v116 = vsel %vm63, %v42, 0
    %v119 = vsel %vm63, %v43, 0
    %v122 = vsel %vm63, %v44, 0
    %v125 = vsel %vm63, %v45, 0
    %v128 = vsel %vm63, %v46, 0
    %v131 = vsel %vm63, %v47, 0
    %v134 = vsel %vm63, %v48, 0
    %v137 = vsel %vm63, %v49, 0
    %v140 = vsel %vm63, %v50, 0
    %v143 = vsel %vm63, %v51, 0
    %v146 = vsel %vm63, %v52, 0
    %v149 = vsel %vm63, %v53, 0
    %v152 = vsel %vm63, %v54, 0
    %v155 = vsel %vm63, %v55, 0
    %v158 = vsel %vm63, %v56, 0
    %v161 = vsel %vm63, %v57, 0
    %v164 = vsel %vm63, %v58, 0
    %v167 = vsel %vm63, %v59, 0
    %v170 = vsel %vm63, %v60, 0
    %v173 = vsel %vm63, %v61, 0
    %v176 = vsel %vm63, %v62, 0
    %178 = vmatprep.subr.mxu0 0.0
    %179 = vmatpush1.xpose.msra.mxu0 %v128
    %180 = vmatprep.subr.mxu0 0.0
    %181 = vmatpush1.xpose.msra.mxu0 %v125
    %182 = vmatprep.subr.mxu0 0.0
    %183 = vmatpush1.xpose.msra.mxu0 %v122
    %184 = vmatprep.subr.mxu0 0.0
    %185 = vmatpush1.xpose.msra.mxu0 %v119
    %186 = vmatprep.subr.mxu0 0.0
    %187 = vmatpush1.xpose.msra.mxu0 %v116
    %188 = vmatprep.subr.mxu0 0.0
    %189 = vmatpush1.xpose.msra.mxu0 %v113
    %190 = vmatprep.subr.mxu0 0.0
    %191 = vmatpush1.xpose.msra.mxu0 %v110
    %192 = vmatprep.subr.mxu0 0.0
    %193 = vmatpush1.xpose.msra.mxu0 %v107
    %194 = vmatprep.subr.mxu0 0.0
    %195 = vmatpush1.xpose.msra.mxu0 %v104
    %196 = vmatprep.subr.mxu0 0.0
    %197 = vmatpush1.xpose.msra.mxu0 %v101
    %198 = vmatprep.subr.mxu0 0.0
    %199 = vmatpush1.xpose.msra.mxu0 %v98
    %200 = vmatprep.subr.mxu0 0.0
    %201 = vmatpush1.xpose.msra.mxu0 %v95
    %202 = vmatprep.subr.mxu0 0.0
    %203 = vmatpush1.xpose.msra.mxu0 %v92
    %204 = vmatprep.subr.mxu0 0.0
    %205 = vmatpush1.xpose.msra.mxu0 %v89
    %206 = vmatprep.subr.mxu0 0.0
    %207 = vmatpush1.xpose.msra.mxu0 %v86
    %208 = vmatprep.subr.mxu0 0.0
    %209 = vmatpush1.xpose.msra.mxu0 %v83
    %210 = vmatprep.subr.mxu0 0.0
    %211 = vmatpush2.xpose.msra.mxu0 %v176
    %212 = vmatprep.subr.mxu0 0.0
    %213 = vmatpush2.xpose.msra.mxu0 %v173
    %214 = vmatprep.subr.mxu0 0.0
    %215 = vmatpush2.xpose.msra.mxu0 %v170
    %216 = vmatprep.subr.mxu0 0.0
    %217 = vmatpush2.xpose.msra.mxu0 %v167
    %218 = vmatprep.subr.mxu0 0.0
    %219 = vmatpush2.xpose.msra.mxu0 %v164
    %220 = vmatprep.subr.mxu0 0.0
    %221 = vmatpush2.xpose.msra.mxu0 %v161
    %222 = vmatprep.subr.mxu0 0.0
    %223 = vmatpush2.xpose.msra.mxu0 %v158
    %224 = vmatprep.subr.mxu0 0.0
    %225 = vmatpush2.xpose.msra.mxu0 %v155
    %226 = vmatprep.subr.mxu0 0.0
    %227 = vmatpush2.xpose.msra.mxu0 %v152
    %228 = vmatprep.subr.mxu0 0.0
    %229 = vmatpush2.xpose.msra.mxu0 %v149
    %230 = vmatprep.subr.mxu0 0.0
    %231 = vmatpush2.xpose.msra.mxu0 %v146
    %232 = vmatprep.subr.mxu0 0.0
    %233 = vmatpush2.xpose.msra.mxu0 %v143
    %234 = vmatprep.subr.mxu0 0.0
    %235 = vmatpush2.xpose.msra.mxu0 %v140
    %236 = vmatprep.subr.mxu0 0.0
    %237 = vmatpush2.xpose.msra.mxu0 %v137
    %238 = vmatprep.subr.mxu0 0.0
    %239 = vmatpush2.xpose.msra.mxu0 %v134
    %240 = vmatprep.subr.mxu0 0.0
    %241 = vmatpush2.xpose.msra.mxu0 %v131
    %242 = vmatprep.mubr.f32.mxu0 0.0
    %243 = vmatmul.mubr.f32.gmra.mxu0 %v65
    %v244 = vpop.f32.mrf.mxu0
    %v245 = vadd.f32 0.0, %v244
    %v246 = vpop.f32.mrf.mxu0
    %v247 = vadd.f32 0.0, %v246
    %248 = vmatprep.mubr.f32.mxu0 0.0
    %249 = vmatmul.mubr.f32.gmra.mxu0 %v68
    %v250 = vpop.f32.mrf.mxu0
    %v251 = vadd.f32 0.0, %v250
    %v252 = vpop.f32.mrf.mxu0
    %v253 = vadd.f32 0.0, %v252
    %254 = vmatprep.mubr.f32.mxu0 0.0
    %255 = vmatmul.mubr.f32.gmra.mxu0 %v71
    %v256 = vpop.f32.mrf.mxu0
    %v257 = vadd.f32 0.0, %v256
    %v258 = vpop.f32.mrf.mxu0
    %v259 = vadd.f32 0.0, %v258
    %260 = vmatprep.mubr.f32.mxu0 0.0
    %261 = vmatmul.mubr.f32.gmra.mxu0 %v74
    %v262 = vpop.f32.mrf.mxu0
    %v263 = vadd.f32 0.0, %v262
    %v264 = vpop.f32.mrf.mxu0
    %v265 = vadd.f32 0.0, %v264
    %266 = vmatprep.mubr.f32.mxu0 0.0
    %267 = vmatmul.mubr.f32.gmra.mxu0 %v77
    %v268 = vpop.f32.mrf.mxu0
    %v269 = vadd.f32 0.0, %v268
    %v270 = vpop.f32.mrf.mxu0
    %v271 = vadd.f32 0.0, %v270
    %272 = vmatprep.mubr.f32.mxu0 0.0
    %273 = vmatmul.mubr.f32.gmra.mxu0 %v80
    %v274 = vpop.f32.mrf.mxu0
    %v275 = vadd.f32 0.0, %v274
    %v276 = vpop.f32.mrf.mxu0
    %v277 = vadd.f32 0.0, %v276
    %278 = vdwg.mxu0
    %279 = vst [vmem:[%s2] sm:$0xff] %v245
    %280 = vst [vmem:[%s2 + $0x8] sm:$0xff] %v247
    %281 = vst [vmem:[%s2 + $0x10] sm:$0xff] %v251
    %282 = vst [vmem:[%s2 + $0x18] sm:$0xff] %v253
    %283 = vst [vmem:[%s2 + $0x20] sm:$0xff] %v257
    %284 = vst [vmem:[%s2 + $0x28] sm:$0xff] %v259
    %285 = vst [vmem:[%s2 + $0x30] sm:$0xff] %v263
    %286 = vst [vmem:[%s2 + $0x38] sm:$0xff] %v265
    %287 = vst [vmem:[%s2 + $0x40] sm:$0xff] %v269
    %288 = vst [vmem:[%s2 + $0x48] sm:$0xff] %v271
    %289 = vst [vmem:[%s2 + $0x50] sm:$0xff] %v275
    %290 = vst [vmem:[%s2 + $0x58] sm:$0xff] %v277
    // Predicated region
    $region14: #{sht.2} parent=1 // pred_check
      _
    $region15: #{sht.2} parent=1 // pred_check_branch
      %292 = sbr.rel (0) target = $region17
    $region16: #{sht.2} parent=1 // pred_region
      _
    $region17: #{sht.2} parent=1 // pred_fallthru
      _
    // Predicated region
    $region18: #{sht.2} parent=1 // pred_check
      _
    $region19: #{sht.2} parent=1 // pred_check_branch
      %294 = sbr.rel (0) target = $region21
    $region20: #{sht.2} parent=1 // pred_region
      _
    $region21: #{sht.2} parent=1 // pred_fallthru
      _
    %295 = vsyncpa [#allocation3], 1

// kernel: sht.3
$region0: #{sht.3}
  #allocation0 [shape = 'u32[]', space=smem, size = 0x4, offset = 0x4, fixed_abs, tag = 'smem constant byte address 0x4 - core index']
  #allocation1 [shape = 'u32[144,128]{1,0:T(1,128)}', space=vmem, size = 0x12000, scoped, tag = 'internal scratch']
  %s0 = inlined_call_operand.vmem [shape: f32[24,2,16,16], index: 0, kind: input, shape index: {}]
  %s1 = inlined_call_operand.hbm [shape: f32[24,128,16], index: 1, kind: input, shape index: {}]
  %s2 = inlined_call_operand.vmem [shape: f32[24,2,16,128], index: 2, kind: output, shape index: {}]
  %s3 = sld [smem:[#allocation0]]
  $region45: #{sht.3} parent=0
    _
  %s5 = ssub.s32 1, %s3
  %s6 = scalar_select 0, %s5, %s3
  $region1: #{sht.3} parent=0
    #allocation2 [shape = 'u8[1048576]{0}', space=vmem, size = 0x100000, scoped, tag = 'input window, operand 1']
    #allocation3 [shape = 's32[2]{0}', space=sflag, size = 0x8, scoped, tag = 'scoped memory for sht.3']
    %7 = vsyncpa [#allocation3], 0
    %s8 = scalar_lea.sflag [#allocation3], 1
    %9 = vsyncpa %s8, 0
    loop: start=0, step=1, limit=5
    $region2: #{sht.3} parent=1 // loop_pre_header
      _
    $region3: #{sht.3} parent=1 // loop_header
      %s11 = sphi 0, %s15
      %p12 = scmp.ge.s32.totalorder %s11, 5
      %s18 = sphi 0, %s37
      %s19 = sphi 0, %s33
      %s20 = sphi 0, %s29
      %s21 = sphi 0, %s18
      %s22 = sphi 0, %s19
      %s23 = sphi 0, %s20
      %s24 = sphi 0, %s21
      %s25 = sphi 0, %s22
      %s26 = sphi 0, %s23
      %s42 = sphi 0, %s44
      %s45 = sphi 0, %s42
      %s46 = sphi 0, %s45
      %s62 = sphi 0, %s46
      %s70 = sphi 0, %s72
      %s73 = sphi 0, %s70
      %s74 = sphi 0, %s73
      %s90 = sphi 0, %s74
      %s100 = sphi 0, %s102
      %s103 = sphi 0, %s100
      %s104 = sphi 0, %s103
      %s120 = sphi 0, %s104
    $region4: #{sht.3} parent=1 // loop_header_branch
      %14 = sbr.rel (%p12) target = $region8
    $region5: #{sht.3} parent=1 // loop_body
      %s16 = ssub.s32 %s11, 1
      %s17 = ssub.s32 %s11, 2
      %s27 = sadd.s32 1, %s20
      %p28 = scmp.ge.s32.totalorder %s27, 1
      %s29 = scalar_select %p28, 0, %s27
      %s30 = sadd.s32 1, %s19
      %s31 = scalar_select %p28, %s30, %s19
      %p32 = scmp.ge.s32.totalorder %s31, 3
      %s33 = scalar_select %p32, 0, %s31
      %s34 = sadd.s32 1, %s18
      %s35 = scalar_select %p32, %s34, %s18
      %p36 = scmp.ge.s32.totalorder %s35, 1
      %s37 = scalar_select %p36, 0, %s35
      %s38 = ssub.s32 %s19, %s33
      %s39 = ssub.s32 %s18, %s37
      %s40 = sor.u32 %s38, %s39
      %p41 = scmp.eq.s32.totalorder %s40, 0
      %s43 = sadd.s32 %s42, 1
      %s44 = scalar_select %p41, %s42, %s43
      %p47 = pneg %p41
      %p48 = scmp.eq.s32.totalorder %s11, 2
      %p49 = por %p47, %p48
      %p50 = scmp.ne.s32.totalorder %s42, %s45
      %p51 = scmp.eq.s32.totalorder %s11, 0
      %p52 = por %p50, %p51
      %p53 = scmp.ne.s32.totalorder %s42, %s45
      %p54 = scmp.eq.s32.totalorder %s16, 2
      %p55 = por %p53, %p54
      %p56 = scmp.ne.s32.totalorder %s45, %s46
      %p57 = scmp.eq.s32.totalorder %s16, 0
      %p58 = por %p56, %p57
      %p59 = scmp.ne.s32.totalorder %s45, %s46
      %p60 = scmp.eq.s32.totalorder %s17, 2
      %p61 = por %p59, %p60
      %p63 = scmp.ne.s32.totalorder %s46, %s62
      %p64 = scmp.eq.s32.totalorder %s17, 0
      %p65 = por %p63, %p64
      %s66 = ssub.s32 %s19, %s33
      %s67 = ssub.s32 %s20, %s29
      %s68 = sor.u32 %s66, %s67
      %p69 = scmp.eq.s32.totalorder %s68, 0
      %s71 = sadd.s32 %s70, 1
      %s72 = scalar_select %p69, %s70, %s71
      %p75 = pneg %p69
      %p76 = scmp.eq.s32.totalorder %s11, 2
      %p77 = por %p75, %p76
      %p78 = scmp.ne.s32.totalorder %s70, %s73
      %p79 = scmp.eq.s32.totalorder %s11, 0
      %p80 = por %p78, %p79
      %p81 = scmp.ne.s32.totalorder %s70, %s73
      %p82 = scmp.eq.s32.totalorder %s16, 2
      %p83 = por %p81, %p82
      %p84 = scmp.ne.s32.totalorder %s73, %s74
      %p85 = scmp.eq.s32.totalorder %s16, 0
      %p86 = por %p84, %p85
      %p87 = scmp.ne.s32.totalorder %s73, %s74
      %p88 = scmp.eq.s32.totalorder %s17, 2
      %p89 = por %p87, %p88
      %p91 = scmp.ne.s32.totalorder %s74, %s90
      %p92 = scmp.eq.s32.totalorder %s17, 0
      %p93 = por %p91, %p92
      %s94 = ssub.s32 %s19, %s33
      %s95 = ssub.s32 %s18, %s37
      %s96 = sor.u32 %s94, %s95
      %s97 = ssub.s32 %s20, %s29
      %s98 = sor.u32 %s96, %s97
      %p99 = scmp.eq.s32.totalorder %s98, 0
      %s101 = sadd.s32 %s100, 1
      %s102 = scalar_select %p99, %s100, %s101
      %p105 = pneg %p99
      %p106 = scmp.eq.s32.totalorder %s11, 2
      %p107 = por %p105, %p106
      %p108 = scmp.ne.s32.totalorder %s100, %s103
      %p109 = scmp.eq.s32.totalorder %s11, 0
      %p110 = por %p108, %p109
      %p111 = scmp.ne.s32.totalorder %s100, %s103
      %p112 = scmp.eq.s32.totalorder %s16, 2
      %p113 = por %p111, %p112
      %p114 = scmp.ne.s32.totalorder %s103, %s104
      %p115 = scmp.eq.s32.totalorder %s16, 0
      %p116 = por %p114, %p115
      %p117 = scmp.ne.s32.totalorder %s103, %s104
      %p118 = scmp.eq.s32.totalorder %s17, 2
      %p119 = por %p117, %p118
      %p121 = scmp.ne.s32.totalorder %s104, %s120
      %p122 = scmp.eq.s32.totalorder %s17, 0
      %p123 = por %p121, %p122
      %p124 = scmp.le.s32.totalorder 1, %s11
      %p125 = scmp.lt.s32.totalorder %s11, 4
      %p126 = pnand %p124, %p125
      %p127 = pneg %p126
      // Predicated region
      $region9: #{sht.3} parent=5 // pred_check
        _
      $region10: #{sht.3} parent=5 // pred_check_branch
        %129 = sbr.rel (%p126) target = $region12
      $region11: #{sht.3} parent=5 // pred_region
        %s130 = ssub.s32 %s11, 1
      $region12: #{sht.3} parent=5 // pred_fallthru
        _
      %p131 = scmp.lt.s32.totalorder %s11, 3
      // Predicated region
      $region13: #{sht.3} parent=5 // pred_check
        %p132 = pneg %p131
      $region14: #{sht.3} parent=5 // pred_check_branch
        %134 = sbr.rel (%p132) target = $region16
      $region15: #{sht.3} parent=5 // pred_region
        // Predicated region
        $region17: #{sht.3} parent=15 // pred_check
          %p135 = pneg %p52
        $region18: #{sht.3} parent=15 // pred_check_branch
          %137 = sbr.rel (%p135) target = $region20
        $region19: #{sht.3} parent=15 // pred_region
          %s138 = smul.u32 8, %s19
          %s139 = smul.u32 2, %s18
          %p140 = scmp.lt.s32.totalorder %s138, 23
          %s141 = scalar_select %p140, %s138, 23
          %p142 = scmp.lt.s32.totalorder %s139, 1
          %s143 = scalar_select %p142, %s139, 1
          %s144 = smul.addr %s141, 4
          %s145 = sadd.s32 %s143, %s144
          %s146 = smul.addr %s145, 8
          %s147 = scalar_lea.vmem %s0, %s146
          %s148 = smul.u32 8, %s19
          %s149 = smul.u32 2, %s18
        $region20: #{sht.3} parent=15 // pred_fallthru
          _
        // Predicated region
        $region21: #{sht.3} parent=15 // pred_check
          %p150 = pneg %p80
        $region22: #{sht.3} parent=15 // pred_check_branch
          %152 = sbr.rel (%p150) target = $region24
        $region23: #{sht.3} parent=15 // pred_region
          %s153 = sand.u32 %s70, 1
          %s154 = scalar_lea.sflag [#allocation3], %s153
          %s155 = sand.u32 %s70, 1
          %s156 = smul.addr %s155, 1024
          %s157 = scalar_lea.vmem [#allocation2], %s156
          %s158 = smul.u32 8, %s19
          %s159 = smul.u32 16, %s20
          %s161 = ssub.s32 16384, 16384
          %162 = vsyncadd %s154, %s161
          %s163 = smul.addr %s158, 16
          %s164 = sadd.s32 %s159, %s163
          %s165 = smul.addr %s164, 128
          %s166 = scalar_lea.hbm %s1, %s165
          %s167 = sshll.u32 %s157, 4
          %s168 = int_to_ptr.vmem [resolvable:$true] %s167
          %173 = dma.hbm_to_vmem [thread:$0]  %s166, 16384, %s168, %s154, 128, 128, 8
        $region24: #{sht.3} parent=15 // pred_fallthru
          _
      $region16: #{sht.3} parent=5 // pred_fallthru
        _
      %p174 = scmp.le.s32.totalorder 1, %s11
      %p175 = scmp.lt.s32.totalorder %s11, 4
      %p176 = pnand %p174, %p175
      %p177 = pneg %p176
      // Predicated region
      $region25: #{sht.3} parent=5 // pred_check
        _
      $region26: #{sht.3} parent=5 // pred_check_branch
        %179 = sbr.rel (%p176) target = $region28
      $region27: #{sht.3} parent=5 // pred_region
        %s180 = ssub.s32 %s11, 1
        %s181 = sand.u32 %s73, 1
        %s182 = scalar_lea.sflag [#allocation3], %s181
        %s183 = sand.u32 %s73, 1
        %s184 = smul.addr %s183, 1024
        %s185 = scalar_lea.vmem [#allocation2], %s184
        // Predicated region
        $region29: #{sht.3} parent=27 // pred_check
          %p186 = pneg %p86
        $region30: #{sht.3} parent=27 // pred_check_branch
          %188 = sbr.rel (%p186) target = $region32
        $region31: #{sht.3} parent=27 // pred_region
          %189 = dma.done %s182, 16384
        $region32: #{sht.3} parent=27 // pred_fallthru
          _
        %s190 = smul.u32 8, %s22
        %s191 = smul.u32 2, %s21
        %p192 = scmp.lt.s32.totalorder %s190, 23
        %s193 = scalar_select %p192, %s190, 23
        %p194 = scmp.lt.s32.totalorder %s191, 1
        %s195 = scalar_select %p194, %s191, 1
        %s196 = smul.addr %s193, 4
        %s197 = sadd.s32 %s195, %s196
        %s198 = smul.addr %s197, 8
        %s199 = scalar_lea.vmem %s0, %s198
        %p200 = pneg %p58
        %p201 = pneg %p55
        %s202 = sand.u32 %s73, 1
        %s203 = scalar_lea.sflag [#allocation3], %s202
        %s204 = sand.u32 %s73, 1
        %s205 = smul.addr %s204, 1024
        %s206 = scalar_lea.vmem [#allocation2], %s205
        %p207 = pneg %p86
        %p208 = pneg %p83
        %p209 = pneg %p116
        %p210 = pneg %p113
        %s211 = smul.u32 8, %s22
        %s212 = smul.u32 2, %s21
        %p213 = scmp.lt.s32.totalorder %s211, 23
        %s214 = scalar_select %p213, %s211, 23
        %p215 = scmp.lt.s32.totalorder %s212, 1
        %s216 = scalar_select %p215, %s212, 1
        %p217 = scmp.lt.s32.totalorder %s23, 0
        %s218 = scalar_select %p217, %s23, 0
        %s219 = sadd.s32 %s218, %s216
        %s220 = smul.addr %s214, 4
        %s221 = sadd.s32 %s219, %s220
        %s222 = smul.addr %s221, 8
        %s223 = scalar_lea.vmem %s2, %s222
        %s224 = smul.u32 8, %s22
        %s225 = smul.u32 2, %s21
        %p226 = scmp.lt.s32.totalorder %s224, 23
        %s227 = scalar_select %p226, %s224, 23
        %p228 = scmp.lt.s32.totalorder %s225, 1
        %s229 = scalar_select %p228, %s225, 1
        %s230 = smul.addr %s227, 4
        %s231 = sadd.s32 %s229, %s230
        %s232 = smul.addr %s231, 8
        %s233 = scalar_lea.vmem %s0, %s232
        %s234 = smul.u32 8, %s22
        %s235 = smul.u32 2, %s21
        %s236 = smul.u32 8, %s22
        %s237 = smul.u32 16, %s23
        %s238 = smul.u32 8, %s22
        %s239 = smul.u32 2, %s21
        %p240 = scmp.lt.s32.totalorder %s238, 23
        %s241 = scalar_select %p240, %s238, 23
        %p242 = scmp.lt.s32.totalorder %s239, 1
        %s243 = scalar_select %p242, %s239, 1
        %p244 = scmp.lt.s32.totalorder %s23, 0
        %s245 = scalar_select %p244, %s23, 0
        %s246 = sadd.s32 %s245, %s243
        %s247 = smul.addr %s241, 4
        %s248 = sadd.s32 %s246, %s247
        %s249 = smul.addr %s248, 8
        %s250 = scalar_lea.vmem %s2, %s249
        %s251 = smul.u32 8, %s22
        %s252 = smul.u32 2, %s21
        %v253 = vld [vmem:[%s233] sm:$0xff]
        %v254 = vld [vmem:[%s233 + $0x8] sm:$0xff]
        %v255 = vld [vmem:[%s233 + $0x10] sm:$0xff]
        %v256 = vld [vmem:[%s233 + $0x18] sm:$0xff]
        %v257 = vld [vmem:[%s233 + $0x20] sm:$0xff]
        %v258 = vld [vmem:[%s233 + $0x28] sm:$0xff]
        %v259 = vld [vmem:[%s233 + $0x30] sm:$0xff]
        %v260 = vld [vmem:[%s233 + $0x38] sm:$0xff]
        %v261 = vld [vmem:[%s233 + $0x40] sm:$0xff]
        %v262 = vld [vmem:[%s233 + $0x48] sm:$0xff]
        %v263 = vld [vmem:[%s233 + $0x50] sm:$0xff]
        %v264 = vld [vmem:[%s233 + $0x58] sm:$0xff]
        %v265 = vld [vmem:[%s233 + $0x60] sm:$0xff]
        %v266 = vld [vmem:[%s233 + $0x68] sm:$0xff]
        %v267 = vld [vmem:[%s233 + $0x70] sm:$0xff]
        %v268 = vld [vmem:[%s233 + $0x78] sm:$0xff]
        %v269 = vld [vmem:[%s233 + $0x80] sm:$0xff]
        %v270 = vld [vmem:[%s233 + $0x88] sm:$0xff]
        %v271 = vld [vmem:[%s233 + $0x90] sm:$0xff]
        %v272 = vld [vmem:[%s233 + $0x98] sm:$0xff]
        %v273 = vld [vmem:[%s233 + $0xa0] sm:$0xff]
        %v274 = vld [vmem:[%s233 + $0xa8] sm:$0xff]
        %v275 = vld [vmem:[%s233 + $0xb0] sm:$0xff]
        %v276 = vld [vmem:[%s233 + $0xb8] sm:$0xff]
        %v277 = vld [vmem:[%s233 + $0xc0] sm:$0xff]
        %v278 = vld [vmem:[%s233 + $0xc8] sm:$0xff]
        %v279 = vld [vmem:[%s233 + $0xd0] sm:$0xff]
        %v280 = vld [vmem:[%s233 + $0xd8] sm:$0xff]
        %v281 = vld [vmem:[%s233 + $0xe0] sm:$0xff]
        %v282 = vld [vmem:[%s233 + $0xe8] sm:$0xff]
        %v283 = vld [vmem:[%s233 + $0xf0] sm:$0xff]
        %v284 = vld [vmem:[%s233 + $0xf8] sm:$0xff]
        %v285 = vld [vmem:[%s185] sm:$0xff]
        %v286 = vld [vmem:[%s185 + $0x8] sm:$0xff]
        %v287 = vld [vmem:[%s185 + $0x10] sm:$0xff]
        %v288 = vld [vmem:[%s185 + $0x18] sm:$0xff]
        %v289 = vld [vmem:[%s185 + $0x20] sm:$0xff]
        %v290 = vld [vmem:[%s185 + $0x28] sm:$0xff]
        %v291 = vld [vmem:[%s185 + $0x30] sm:$0xff]
        %v292 = vld [vmem:[%s185 + $0x38] sm:$0xff]
        %v293 = vld [vmem:[%s185 + $0x40] sm:$0xff]
        %v294 = vld [vmem:[%s185 + $0x48] sm:$0xff]
        %v295 = vld [vmem:[%s185 + $0x50] sm:$0xff]
        %v296 = vld [vmem:[%s185 + $0x58] sm:$0xff]
        %v297 = vld [vmem:[%s185 + $0x60] sm:$0xff]
        %v298 = vld [vmem:[%s185 + $0x68] sm:$0xff]
        %v299 = vld [vmem:[%s185 + $0x70] sm:$0xff]
        %v300 = vld [vmem:[%s185 + $0x78] sm:$0xff]
        %v301 = vld [vmem:[%s185 + $0x80] sm:$0xff]
        %v302 = vld [vmem:[%s185 + $0x88] sm:$0xff]
        %v303 = vld [vmem:[%s185 + $0x90] sm:$0xff]
        %v304 = vld [vmem:[%s185 + $0x98] sm:$0xff]
        %v305 = vld [vmem:[%s185 + $0xa0] sm:$0xff]
        %v306 = vld [vmem:[%s185 + $0xa8] sm:$0xff]
        %v307 = vld [vmem:[%s185 + $0xb0] sm:$0xff]
        %v308 = vld [vmem:[%s185 + $0xb8] sm:$0xff]
        %v309 = vld [vmem:[%s185 + $0xc0] sm:$0xff]
        %v310 = vld [vmem:[%s185 + $0xc8] sm:$0xff]
        %v311 = vld [vmem:[%s185 + $0xd0] sm:$0xff]
        %v312 = vld [vmem:[%s185 + $0xd8] sm:$0xff]
        %v313 = vld [vmem:[%s185 + $0xe0] sm:$0xff]
        %v314 = vld [vmem:[%s185 + $0xe8] sm:$0xff]
        %v315 = vld [vmem:[%s185 + $0xf0] sm:$0xff]
        %v316 = vld [vmem:[%s185 + $0xf8] sm:$0xff]
        %v317 = vld [vmem:[%s185 + $0x100] sm:$0xff]
        %v318 = vld [vmem:[%s185 + $0x108] sm:$0xff]
        %v319 = vld [vmem:[%s185 + $0x110] sm:$0xff]
        %v320 = vld [vmem:[%s185 + $0x118] sm:$0xff]
        %v321 = vld [vmem:[%s185 + $0x120] sm:$0xff]
        %v322 = vld [vmem:[%s185 + $0x128] sm:$0xff]
        %v323 = vld [vmem:[%s185 + $0x130] sm:$0xff]
        %v324 = vld [vmem:[%s185 + $0x138] sm:$0xff]
        %v325 = vld [vmem:[%s185 + $0x140] sm:$0xff]
        %v326 = vld [vmem:[%s185 + $0x148] sm:$0xff]
        %v327 = vld [vmem:[%s185 + $0x150] sm:$0xff]
        %v328 = vld [vmem:[%s185 + $0x158] sm:$0xff]
        %v329 = vld [vmem:[%s185 + $0x160] sm:$0xff]
        %v330 = vld [vmem:[%s185 + $0x168] sm:$0xff]
        %v331 = vld [vmem:[%s185 + $0x170] sm:$0xff]
        %v332 = vld [vmem:[%s185 + $0x178] sm:$0xff]
        %v333 = vld [vmem:[%s185 + $0x180] sm:$0xff]
        %v334 = vld [vmem:[%s185 + $0x188] sm:$0xff]
        %v335 = vld [vmem:[%s185 + $0x190] sm:$0xff]
        %v336 = vld [vmem:[%s185 + $0x198] sm:$0xff]
        %v337 = vld [vmem:[%s185 + $0x1a0] sm:$0xff]
        %v338 = vld [vmem:[%s185 + $0x1a8] sm:$0xff]
        %v339 = vld [vmem:[%s185 + $0x1b0] sm:$0xff]
        %v340 = vld [vmem:[%s185 + $0x1b8] sm:$0xff]
        %v341 = vld [vmem:[%s185 + $0x1c0] sm:$0xff]
        %v342 = vld [vmem:[%s185 + $0x1c8] sm:$0xff]
        %v343 = vld [vmem:[%s185 + $0x1d0] sm:$0xff]
        %v344 = vld [vmem:[%s185 + $0x1d8] sm:$0xff]
        %v345 = vld [vmem:[%s185 + $0x1e0] sm:$0xff]
        %v346 = vld [vmem:[%s185 + $0x1e8] sm:$0xff]
        %v347 = vld [vmem:[%s185 + $0x1f0] sm:$0xff]
        %v348 = vld [vmem:[%s185 + $0x1f8] sm:$0xff]
        %v349 = vld [vmem:[%s185 + $0x200] sm:$0xff]
        %v350 = vld [vmem:[%s185 + $0x208] sm:$0xff]
        %v351 = vld [vmem:[%s185 + $0x210] sm:$0xff]
        %v352 = vld [vmem:[%s185 + $0x218] sm:$0xff]
        %v353 = vld [vmem:[%s185 + $0x220] sm:$0xff]
        %v354 = vld [vmem:[%s185 + $0x228] sm:$0xff]
        %v355 = vld [vmem:[%s185 + $0x230] sm:$0xff]
        %v356 = vld [vmem:[%s185 + $0x238] sm:$0xff]
        %v357 = vld [vmem:[%s185 + $0x240] sm:$0xff]
        %v358 = vld [vmem:[%s185 + $0x248] sm:$0xff]
        %v359 = vld [vmem:[%s185 + $0x250] sm:$0xff]
        %v360 = vld [vmem:[%s185 + $0x258] sm:$0xff]
        %v361 = vld [vmem:[%s185 + $0x260] sm:$0xff]
        %v362 = vld [vmem:[%s185 + $0x268] sm:$0xff]
        %v363 = vld [vmem:[%s185 + $0x270] sm:$0xff]
        %v364 = vld [vmem:[%s185 + $0x278] sm:$0xff]
        %v365 = vld [vmem:[%s185 + $0x280] sm:$0xff]
        %v366 = vld [vmem:[%s185 + $0x288] sm:$0xff]
        %v367 = vld [vmem:[%s185 + $0x290] sm:$0xff]
        %v368 = vld [vmem:[%s185 + $0x298] sm:$0xff]
        %v369 = vld [vmem:[%s185 + $0x2a0] sm:$0xff]
        %v370 = vld [vmem:[%s185 + $0x2a8] sm:$0xff]
        %v371 = vld [vmem:[%s185 + $0x2b0] sm:$0xff]
        %v372 = vld [vmem:[%s185 + $0x2b8] sm:$0xff]
        %v373 = vld [vmem:[%s185 + $0x2c0] sm:$0xff]
        %v374 = vld [vmem:[%s185 + $0x2c8] sm:$0xff]
        %v375 = vld [vmem:[%s185 + $0x2d0] sm:$0xff]
        %v376 = vld [vmem:[%s185 + $0x2d8] sm:$0xff]
        %v377 = vld [vmem:[%s185 + $0x2e0] sm:$0xff]
        %v378 = vld [vmem:[%s185 + $0x2e8] sm:$0xff]
        %v379 = vld [vmem:[%s185 + $0x2f0] sm:$0xff]
        %v380 = vld [vmem:[%s185 + $0x2f8] sm:$0xff]
        %v381 = vld [vmem:[%s185 + $0x300] sm:$0xff]
        %v382 = vld [vmem:[%s185 + $0x308] sm:$0xff]
        %v383 = vld [vmem:[%s185 + $0x310] sm:$0xff]
        %v384 = vld [vmem:[%s185 + $0x318] sm:$0xff]
        %v385 = vld [vmem:[%s185 + $0x320] sm:$0xff]
        %v386 = vld [vmem:[%s185 + $0x328] sm:$0xff]
        %v387 = vld [vmem:[%s185 + $0x330] sm:$0xff]
        %v388 = vld [vmem:[%s185 + $0x338] sm:$0xff]
        %v389 = vld [vmem:[%s185 + $0x340] sm:$0xff]
        %v390 = vld [vmem:[%s185 + $0x348] sm:$0xff]
        %v391 = vld [vmem:[%s185 + $0x350] sm:$0xff]
        %v392 = vld [vmem:[%s185 + $0x358] sm:$0xff]
        %v393 = vld [vmem:[%s185 + $0x360] sm:$0xff]
        %v394 = vld [vmem:[%s185 + $0x368] sm:$0xff]
        %v395 = vld [vmem:[%s185 + $0x370] sm:$0xff]
        %v396 = vld [vmem:[%s185 + $0x378] sm:$0xff]
        %v397 = vld [vmem:[%s185 + $0x380] sm:$0xff]
        %v398 = vld [vmem:[%s185 + $0x388] sm:$0xff]
        %v399 = vld [vmem:[%s185 + $0x390] sm:$0xff]
        %v400 = vld [vmem:[%s185 + $0x398] sm:$0xff]
        %v401 = vld [vmem:[%s185 + $0x3a0] sm:$0xff]
        %v402 = vld [vmem:[%s185 + $0x3a8] sm:$0xff]
        %v403 = vld [vmem:[%s185 + $0x3b0] sm:$0xff]
        %v404 = vld [vmem:[%s185 + $0x3b8] sm:$0xff]
        %v405 = vld [vmem:[%s185 + $0x3c0] sm:$0xff]
        %v406 = vld [vmem:[%s185 + $0x3c8] sm:$0xff]
        %v407 = vld [vmem:[%s185 + $0x3d0] sm:$0xff]
        %v408 = vld [vmem:[%s185 + $0x3d8] sm:$0xff]
        %v409 = vld [vmem:[%s185 + $0x3e0] sm:$0xff]
        %v410 = vld [vmem:[%s185 + $0x3e8] sm:$0xff]
        %v411 = vld [vmem:[%s185 + $0x3f0] sm:$0xff]
        %v412 = vld [vmem:[%s185 + $0x3f8] sm:$0xff]
        %vm413 = vcmask 130048
        %v415 = vsel %vm413, %v253, 0
        %v418 = vsel %vm413, %v254, 0
        %v421 = vsel %vm413, %v255, 0
        %v424 = vsel %vm413, %v256, 0
        %v427 = vsel %vm413, %v285, 0
        %v430 = vsel %vm413, %v286, 0
        %v433 = vsel %vm413, %v287, 0
        %v436 = vsel %vm413, %v288, 0
        %v439 = vsel %vm413, %v289, 0
        %v442 = vsel %vm413, %v290, 0
        %v445 = vsel %vm413, %v291, 0
        %v448 = vsel %vm413, %v292, 0
        %v451 = vsel %vm413, %v293, 0
        %v454 = vsel %vm413, %v294, 0
        %v457 = vsel %vm413, %v295, 0
        %v460 = vsel %vm413, %v296, 0
        %v463 = vsel %vm413, %v297, 0
        %v466 = vsel %vm413, %v298, 0
        %v469 = vsel %vm413, %v299, 0
        %v472 = vsel %vm413, %v300, 0
        %474 = vmatprep.subr.mxu0 0.0
        %475 = vmatpush1.xpose.msra.mxu0 %v472
        %476 = vmatprep.subr.mxu0 0.0
        %477 = vmatpush1.xpose.msra.mxu0 %v469
        %478 = vmatprep.subr.mxu0 0.0
        %479 = vmatpush1.xpose.msra.mxu0 %v466
        %480 = vmatprep.subr.mxu0 0.0
        %481 = vmatpush1.xpose.msra.mxu0 %v463
        %482 = vmatprep.subr.mxu0 0.0
        %483 = vmatpush1.xpose.msra.mxu0 %v460
        %484 = vmatprep.subr.mxu0 0.0
        %485 = vmatpush1.xpose.msra.mxu0 %v457
        %486 = vmatprep.subr.mxu0 0.0
        %487 = vmatpush1.xpose.msra.mxu0 %v454
        %488 = vmatprep.subr.mxu0 0.0
        %489 = vmatpush1.xpose.msra.mxu0 %v451
        %490 = vmatprep.subr.mxu0 0.0
        %491 = vmatpush1.xpose.msra.mxu0 %v448
        %492 = vmatprep.subr.mxu0 0.0
        %493 = vmatpush1.xpose.msra.mxu0 %v445
        %494 = vmatprep.subr.mxu0 0.0
        %495 = vmatpush1.xpose.msra.mxu0 %v442
        %496 = vmatprep.subr.mxu0 0.0
        %497 = vmatpush1.xpose.msra.mxu0 %v439
        %498 = vmatprep.subr.mxu0 0.0
        %499 = vmatpush1.xpose.msra.mxu0 %v436
        %500 = vmatprep.subr.mxu0 0.0
        %501 = vmatpush1.xpose.msra.mxu0 %v433
        %502 = vmatprep.subr.mxu0 0.0
        %503 = vmatpush1.xpose.msra.mxu0 %v430
        %504 = vmatprep.subr.mxu0 0.0
        %505 = vmatpush1.xpose.msra.mxu0 %v427
        %506 = vmatprep.subr.mxu0 0.0
        %507 = vmatpush2.xpose.msra.mxu0 0.0
        %508 = vmatprep.subr.mxu0 0.0
        %509 = vmatpush2.xpose.msra.mxu0 0.0
        %510 = vmatprep.subr.mxu0 0.0
        %511 = vmatpush2.xpose.msra.mxu0 0.0
        %512 = vmatprep.subr.mxu0 0.0
        %513 = vmatpush2.xpose.msra.mxu0 0.0
        %514 = vmatprep.subr.mxu0 0.0
        %515 = vmatpush2.xpose.msra.mxu0 0.0
        %516 = vmatprep.subr.mxu0 0.0
        %517 = vmatpush2.xpose.msra.mxu0 0.0
        %518 = vmatprep.subr.mxu0 0.0
        %519 = vmatpush2.xpose.msra.mxu0 0.0
        %520 = vmatprep.subr.mxu0 0.0
        %521 = vmatpush2.xpose.msra.mxu0 0.0
        %522 = vmatprep.subr.mxu0 0.0
        %523 = vmatpush2.xpose.msra.mxu0 0.0
        %524 = vmatprep.subr.mxu0 0.0
        %525 = vmatpush2.xpose.msra.mxu0 0.0
        %526 = vmatprep.subr.mxu0 0.0
        %527 = vmatpush2.xpose.msra.mxu0 0.0
        %528 = vmatprep.subr.mxu0 0.0
        %529 = vmatpush2.xpose.msra.mxu0 0.0
        %530 = vmatprep.subr.mxu0 0.0
        %531 = vmatpush2.xpose.msra.mxu0 0.0
        %532 = vmatprep.subr.mxu0 0.0
        %533 = vmatpush2.xpose.msra.mxu0 0.0
        %534 = vmatprep.subr.mxu0 0.0
        %535 = vmatpush2.xpose.msra.mxu0 0.0
        %536 = vmatprep.subr.mxu0 0.0
        %537 = vmatpush2.xpose.msra.mxu0 0.0
        %538 = vmatprep.mubr.f32.mxu0 0.0
        %539 = vmatmul.mubr.f32.gmra.mxu0 %v415
        %v540 = vpop.f32.mrf.mxu0
        %v541 = vadd.f32 0.0, %v540
        %v542 = vpop.f32.mrf.mxu0
        %543 = vmatprep.mubr.f32.mxu0 0.0
        %544 = vmatmul.mubr.f32.gmra.mxu0 %v418
        %v545 = vpop.f32.mrf.mxu0
        %v546 = vadd.f32 0.0, %v545
        %v547 = vpop.f32.mrf.mxu0
        %548 = vmatprep.mubr.f32.mxu0 0.0
        %549 = vmatmul.mubr.f32.gmra.mxu0 %v421
        %v550 = vpop.f32.mrf.mxu0
        %v551 = vadd.f32 0.0, %v550
        %v552 = vpop.f32.mrf.mxu0
        %553 = vmatprep.mubr.f32.mxu0 0.0
        %554 = vmatmul.mubr.f32.gmra.mxu0 %v424
        %v555 = vpop.f32.mrf.mxu0
        %v556 = vadd.f32 0.0, %v555
        %v557 = vpop.f32.mrf.mxu0
        %558 = vdwg.mxu0
        %v560 = vsel %vm413, %v257, 0
        %v563 = vsel %vm413, %v258, 0
        %v566 = vsel %vm413, %v259, 0
        %v569 = vsel %vm413, %v260, 0
        %v572 = vsel %vm413, %v301, 0
        %v575 = vsel %vm413, %v302, 0
        %v578 = vsel %vm413, %v303, 0
        %v581 = vsel %vm413, %v304, 0
        %v584 = vsel %vm413, %v305, 0
        %v587 = vsel %vm413, %v306, 0
        %v590 = vsel %vm413, %v307, 0
        %v593 = vsel %vm413, %v308, 0
        %v596 = vsel %vm413, %v309, 0
        %v599 = vsel %vm413, %v310, 0
        %v602 = vsel %vm413, %v311, 0
        %v605 = vsel %vm413, %v312, 0
        %v608 = vsel %vm413, %v313, 0
        %v611 = vsel %vm413, %v314, 0
        %v614 = vsel %vm413, %v315, 0
        %v617 = vsel %vm413, %v316, 0
        %619 = vmatprep.subr.mxu0 0.0
        %620 = vmatpush1.xpose.msra.mxu0 %v617
        %621 = vmatprep.subr.mxu0 0.0
        %622 = vmatpush1.xpose.msra.mxu0 %v614
        %623 = vmatprep.subr.mxu0 0.0
        %624 = vmatpush1.xpose.msra.mxu0 %v611
        %625 = vmatprep.subr.mxu0 0.0
        %626 = vmatpush1.xpose.msra.mxu0 %v608
        %627 = vmatprep.subr.mxu0 0.0
        %628 = vmatpush1.xpose.msra.mxu0 %v605
        %629 = vmatprep.subr.mxu0 0.0
        %630 = vmatpush1.xpose.msra.mxu0 %v602
        %631 = vmatprep.subr.mxu0 0.0
        %632 = vmatpush1.xpose.msra.mxu0 %v599
        %633 = vmatprep.subr.mxu0 0.0
        %634 = vmatpush1.xpose.msra.mxu0 %v596
        %635 = vmatprep.subr.mxu0 0.0
        %636 = vmatpush1.xpose.msra.mxu0 %v593
        %637 = vmatprep.subr.mxu0 0.0
        %638 = vmatpush1.xpose.msra.mxu0 %v590
        %639 = vmatprep.subr.mxu0 0.0
        %640 = vmatpush1.xpose.msra.mxu0 %v587
        %641 = vmatprep.subr.mxu0 0.0
        %642 = vmatpush1.xpose.msra.mxu0 %v584
        %643 = vmatprep.subr.mxu0 0.0
        %644 = vmatpush1.xpose.msra.mxu0 %v581
        %645 = vmatprep.subr.mxu0 0.0
        %646 = vmatpush1.xpose.msra.mxu0 %v578
        %647 = vmatprep.subr.mxu0 0.0
        %648 = vmatpush1.xpose.msra.mxu0 %v575
        %649 = vmatprep.subr.mxu0 0.0
        %650 = vmatpush1.xpose.msra.mxu0 %v572
        %651 = vmatprep.subr.mxu0 0.0
        %652 = vmatpush2.xpose.msra.mxu0 0.0
        %653 = vmatprep.subr.mxu0 0.0
        %654 = vmatpush2.xpose.msra.mxu0 0.0
        %655 = vmatprep.subr.mxu0 0.0
        %656 = vmatpush2.xpose.msra.mxu0 0.0
        %657 = vmatprep.subr.mxu0 0.0
        %658 = vmatpush2.xpose.msra.mxu0 0.0
        %659 = vmatprep.subr.mxu0 0.0
        %660 = vmatpush2.xpose.msra.mxu0 0.0
        %661 = vmatprep.subr.mxu0 0.0
        %662 = vmatpush2.xpose.msra.mxu0 0.0
        %663 = vmatprep.subr.mxu0 0.0
        %664 = vmatpush2.xpose.msra.mxu0 0.0
        %665 = vmatprep.subr.mxu0 0.0
        %666 = vmatpush2.xpose.msra.mxu0 0.0
        %667 = vmatprep.subr.mxu0 0.0
        %668 = vmatpush2.xpose.msra.mxu0 0.0
        %669 = vmatprep.subr.mxu0 0.0
        %670 = vmatpush2.xpose.msra.mxu0 0.0
        %671 = vmatprep.subr.mxu0 0.0
        %672 = vmatpush2.xpose.msra.mxu0 0.0
        %673 = vmatprep.subr.mxu0 0.0
        %674 = vmatpush2.xpose.msra.mxu0 0.0
        %675 = vmatprep.subr.mxu0 0.0
        %676 = vmatpush2.xpose.msra.mxu0 0.0
        %677 = vmatprep.subr.mxu0 0.0
        %678 = vmatpush2.xpose.msra.mxu0 0.0
        %679 = vmatprep.subr.mxu0 0.0
        %680 = vmatpush2.xpose.msra.mxu0 0.0
        %681 = vmatprep.subr.mxu0 0.0
        %682 = vmatpush2.xpose.msra.mxu0 0.0
        %683 = vmatprep.mubr.f32.mxu0 0.0
        %684 = vmatmul.mubr.f32.gmra.mxu0 %v560
        %v685 = vpop.f32.mrf.mxu0
        %v686 = vadd.f32 0.0, %v685
        %v687 = vpop.f32.mrf.mxu0
        %688 = vmatprep.mubr.f32.mxu0 0.0
        %689 = vmatmul.mubr.f32.gmra.mxu0 %v563
        %v690 = vpop.f32.mrf.mxu0
        %v691 = vadd.f32 0.0, %v690
        %v692 = vpop.f32.mrf.mxu0
        %693 = vmatprep.mubr.f32.mxu0 0.0
        %694 = vmatmul.mubr.f32.gmra.mxu0 %v566
        %v695 = vpop.f32.mrf.mxu0
        %v696 = vadd.f32 0.0, %v695
        %v697 = vpop.f32.mrf.mxu0
        %698 = vmatprep.mubr.f32.mxu0 0.0
        %699 = vmatmul.mubr.f32.gmra.mxu0 %v569
        %v700 = vpop.f32.mrf.mxu0
        %v701 = vadd.f32 0.0, %v700
        %v702 = vpop.f32.mrf.mxu0
        %703 = vdwg.mxu0
        %v705 = vsel %vm413, %v261, 0
        %v708 = vsel %vm413, %v262, 0
        %v711 = vsel %vm413, %v263, 0
        %v714 = vsel %vm413, %v264, 0
        %v717 = vsel %vm413, %v317, 0
        %v720 = vsel %vm413, %v318, 0
        %v723 = vsel %vm413, %v319, 0
        %v726 = vsel %vm413, %v320, 0
        %v729 = vsel %vm413, %v321, 0
        %v732 = vsel %vm413, %v322, 0
        %v735 = vsel %vm413, %v323, 0
        %v738 = vsel %vm413, %v324, 0
        %v741 = vsel %vm413, %v325, 0
        %v744 = vsel %vm413, %v326, 0
        %v747 = vsel %vm413, %v327, 0
        %v750 = vsel %vm413, %v328, 0
        %v753 = vsel %vm413, %v329, 0
        %v756 = vsel %vm413, %v330, 0
        %v759 = vsel %vm413, %v331, 0
        %v762 = vsel %vm413, %v332, 0
        %764 = vmatprep.subr.mxu0 0.0
        %765 = vmatpush1.xpose.msra.mxu0 %v762
        %766 = vmatprep.subr.mxu0 0.0
        %767 = vmatpush1.xpose.msra.mxu0 %v759
        %768 = vmatprep.subr.mxu0 0.0
        %769 = vmatpush1.xpose.msra.mxu0 %v756
        %770 = vmatprep.subr.mxu0 0.0
        %771 = vmatpush1.xpose.msra.mxu0 %v753
        %772 = vmatprep.subr.mxu0 0.0
        %773 = vmatpush1.xpose.msra.mxu0 %v750
        %774 = vmatprep.subr.mxu0 0.0
        %775 = vmatpush1.xpose.msra.mxu0 %v747
        %776 = vmatprep.subr.mxu0 0.0
        %777 = vmatpush1.xpose.msra.mxu0 %v744
        %778 = vmatprep.subr.mxu0 0.0
        %779 = vmatpush1.xpose.msra.mxu0 %v741
        %780 = vmatprep.subr.mxu0 0.0
        %781 = vmatpush1.xpose.msra.mxu0 %v738
        %782 = vmatprep.subr.mxu0 0.0
        %783 = vmatpush1.xpose.msra.mxu0 %v735
        %784 = vmatprep.subr.mxu0 0.0
        %785 = vmatpush1.xpose.msra.mxu0 %v732
        %786 = vmatprep.subr.mxu0 0.0
        %787 = vmatpush1.xpose.msra.mxu0 %v729
        %788 = vmatprep.subr.mxu0 0.0
        %789 = vmatpush1.xpose.msra.mxu0 %v726
        %790 = vmatprep.subr.mxu0 0.0
        %791 = vmatpush1.xpose.msra.mxu0 %v723
        %792 = vmatprep.subr.mxu0 0.0
        %793 = vmatpush1.xpose.msra.mxu0 %v720
        %794 = vmatprep.subr.mxu0 0.0
        %795 = vmatpush1.xpose.msra.mxu0 %v717
        %796 = vmatprep.subr.mxu0 0.0
        %797 = vmatpush2.xpose.msra.mxu0 0.0
        %798 = vmatprep.subr.mxu0 0.0
        %799 = vmatpush2.xpose.msra.mxu0 0.0
        %800 = vmatprep.subr.mxu0 0.0
        %801 = vmatpush2.xpose.msra.mxu0 0.0
        %802 = vmatprep.subr.mxu0 0.0
        %803 = vmatpush2.xpose.msra.mxu0 0.0
        %804 = vmatprep.subr.mxu0 0.0
        %805 = vmatpush2.xpose.msra.mxu0 0.0
        %806 = vmatprep.subr.mxu0 0.0
        %807 = vmatpush2.xpose.msra.mxu0 0.0
        %808 = vmatprep.subr.mxu0 0.0
        %809 = vmatpush2.xpose.msra.mxu0 0.0
        %810 = vmatprep.subr.mxu0 0.0
        %811 = vmatpush2.xpose.msra.mxu0 0.0
        %812 = vmatprep.subr.mxu0 0.0
        %813 = vmatpush2.xpose.msra.mxu0 0.0
        %814 = vmatprep.subr.mxu0 0.0
        %815 = vmatpush2.xpose.msra.mxu0 0.0
        %816 = vmatprep.subr.mxu0 0.0
        %817 = vmatpush2.xpose.msra.mxu0 0.0
        %818 = vmatprep.subr.mxu0 0.0
        %819 = vmatpush2.xpose.msra.mxu0 0.0
        %820 = vmatprep.subr.mxu0 0.0
        %821 = vmatpush2.xpose.msra.mxu0 0.0
        %822 = vmatprep.subr.mxu0 0.0
        %823 = vmatpush2.xpose.msra.mxu0 0.0
        %824 = vmatprep.subr.mxu0 0.0
        %825 = vmatpush2.xpose.msra.mxu0 0.0
        %826 = vmatprep.subr.mxu0 0.0
        %827 = vmatpush2.xpose.msra.mxu0 0.0
        %828 = vmatprep.mubr.f32.mxu0 0.0
        %829 = vmatmul.mubr.f32.gmra.mxu0 %v705
        %v830 = vpop.f32.mrf.mxu0
        %v831 = vadd.f32 0.0, %v830
        %v832 = vpop.f32.mrf.mxu0
        %833 = vmatprep.mubr.f32.mxu0 0.0
        %834 = vmatmul.mubr.f32.gmra.mxu0 %v708
        %v835 = vpop.f32.mrf.mxu0
        %v836 = vadd.f32 0.0, %v835
        %v837 = vpop.f32.mrf.mxu0
        %838 = vmatprep.mubr.f32.mxu0 0.0
        %839 = vmatmul.mubr.f32.gmra.mxu0 %v711
        %v840 = vpop.f32.mrf.mxu0
        %v841 = vadd.f32 0.0, %v840
        %v842 = vpop.f32.mrf.mxu0
        %843 = vmatprep.mubr.f32.mxu0 0.0
        %844 = vmatmul.mubr.f32.gmra.mxu0 %v714
        %v845 = vpop.f32.mrf.mxu0
        %v846 = vadd.f32 0.0, %v845
        %v847 = vpop.f32.mrf.mxu0
        %848 = vdwg.mxu0
        %v850 = vsel %vm413, %v265, 0
        %v853 = vsel %vm413, %v266, 0
        %v856 = vsel %vm413, %v267, 0
        %v859 = vsel %vm413, %v268, 0
        %v862 = vsel %vm413, %v333, 0
        %v865 = vsel %vm413, %v334, 0
        %v868 = vsel %vm413, %v335, 0
        %v871 = vsel %vm413, %v336, 0
        %v874 = vsel %vm413, %v337, 0
        %v877 = vsel %vm413, %v338, 0
        %v880 = vsel %vm413, %v339, 0
        %v883 = vsel %vm413, %v340, 0
        %v886 = vsel %vm413, %v341, 0
        %v889 = vsel %vm413, %v342, 0
        %v892 = vsel %vm413, %v343, 0
        %v895 = vsel %vm413, %v344, 0
        %v898 = vsel %vm413, %v345, 0
        %v901 = vsel %vm413, %v346, 0
        %v904 = vsel %vm413, %v347, 0
        %v907 = vsel %vm413, %v348, 0
        %909 = vmatprep.subr.mxu0 0.0
        %910 = vmatpush1.xpose.msra.mxu0 %v907
        %911 = vmatprep.subr.mxu0 0.0
        %912 = vmatpush1.xpose.msra.mxu0 %v904
        %913 = vmatprep.subr.mxu0 0.0
        %914 = vmatpush1.xpose.msra.mxu0 %v901
        %915 = vmatprep.subr.mxu0 0.0
        %916 = vmatpush1.xpose.msra.mxu0 %v898
        %917 = vmatprep.subr.mxu0 0.0
        %918 = vmatpush1.xpose.msra.mxu0 %v895
        %919 = vmatprep.subr.mxu0 0.0
        %920 = vmatpush1.xpose.msra.mxu0 %v892
        %921 = vmatprep.subr.mxu0 0.0
        %922 = vmatpush1.xpose.msra.mxu0 %v889
        %923 = vmatprep.subr.mxu0 0.0
        %924 = vmatpush1.xpose.msra.mxu0 %v886
        %925 = vmatprep.subr.mxu0 0.0
        %926 = vmatpush1.xpose.msra.mxu0 %v883
        %927 = vmatprep.subr.mxu0 0.0
        %928 = vmatpush1.xpose.msra.mxu0 %v880
        %929 = vmatprep.subr.mxu0 0.0
        %930 = vmatpush1.xpose.msra.mxu0 %v877
        %931 = vmatprep.subr.mxu0 0.0
        %932 = vmatpush1.xpose.msra.mxu0 %v874
        %933 = vmatprep.subr.mxu0 0.0
        %934 = vmatpush1.xpose.msra.mxu0 %v871
        %935 = vmatprep.subr.mxu0 0.0
        %936 = vmatpush1.xpose.msra.mxu0 %v868
        %937 = vmatprep.subr.mxu0 0.0
        %938 = vmatpush1.xpose.msra.mxu0 %v865
        %939 = vmatprep.subr.mxu0 0.0
        %940 = vmatpush1.xpose.msra.mxu0 %v862
        %941 = vmatprep.subr.mxu0 0.0
        %942 = vmatpush2.xpose.msra.mxu0 0.0
        %943 = vmatprep.subr.mxu0 0.0
        %944 = vmatpush2.xpose.msra.mxu0 0.0
        %945 = vmatprep.subr.mxu0 0.0
        %946 = vmatpush2.xpose.msra.mxu0 0.0
        %947 = vmatprep.subr.mxu0 0.0
        %948 = vmatpush2.xpose.msra.mxu0 0.0
        %949 = vmatprep.subr.mxu0 0.0
        %950 = vmatpush2.xpose.msra.mxu0 0.0
        %951 = vmatprep.subr.mxu0 0.0
        %952 = vmatpush2.xpose.msra.mxu0 0.0
        %953 = vmatprep.subr.mxu0 0.0
        %954 = vmatpush2.xpose.msra.mxu0 0.0
        %955 = vmatprep.subr.mxu0 0.0
        %956 = vmatpush2.xpose.msra.mxu0 0.0
        %957 = vmatprep.subr.mxu0 0.0
        %958 = vmatpush2.xpose.msra.mxu0 0.0
        %959 = vmatprep.subr.mxu0 0.0
        %960 = vmatpush2.xpose.msra.mxu0 0.0
        %961 = vmatprep.subr.mxu0 0.0
        %962 = vmatpush2.xpose.msra.mxu0 0.0
        %963 = vmatprep.subr.mxu0 0.0
        %964 = vmatpush2.xpose.msra.mxu0 0.0
        %965 = vmatprep.subr.mxu0 0.0
        %966 = vmatpush2.xpose.msra.mxu0 0.0
        %967 = vmatprep.subr.mxu0 0.0
        %968 = vmatpush2.xpose.msra.mxu0 0.0
        %969 = vmatprep.subr.mxu0 0.0
        %970 = vmatpush2.xpose.msra.mxu0 0.0
        %971 = vmatprep.subr.mxu0 0.0
        %972 = vmatpush2.xpose.msra.mxu0 0.0
        %973 = vmatprep.mubr.f32.mxu0 0.0
        %974 = vmatmul.mubr.f32.gmra.mxu0 %v850
        %v975 = vpop.f32.mrf.mxu0
        %v976 = vadd.f32 0.0, %v975
        %v977 = vpop.f32.mrf.mxu0
        %978 = vmatprep.mubr.f32.mxu0 0.0
        %979 = vmatmul.mubr.f32.gmra.mxu0 %v853
        %v980 = vpop.f32.mrf.mxu0
        %v981 = vadd.f32 0.0, %v980
        %v982 = vpop.f32.mrf.mxu0
        %983 = vmatprep.mubr.f32.mxu0 0.0
        %984 = vmatmul.mubr.f32.gmra.mxu0 %v856
        %v985 = vpop.f32.mrf.mxu0
        %v986 = vadd.f32 0.0, %v985
        %v987 = vpop.f32.mrf.mxu0
        %988 = vmatprep.mubr.f32.mxu0 0.0
        %989 = vmatmul.mubr.f32.gmra.mxu0 %v859
        %v990 = vpop.f32.mrf.mxu0
        %v991 = vadd.f32 0.0, %v990
        %v992 = vpop.f32.mrf.mxu0
        %993 = vdwg.mxu0
        %v995 = vsel %vm413, %v269, 0
        %v998 = vsel %vm413, %v270, 0
        %v1001 = vsel %vm413, %v271, 0
        %v1004 = vsel %vm413, %v272, 0
        %v1007 = vsel %vm413, %v349, 0
        %v1010 = vsel %vm413, %v350, 0
        %v1013 = vsel %vm413, %v351, 0
        %v1016 = vsel %vm413, %v352, 0
        %v1019 = vsel %vm413, %v353, 0
        %v1022 = vsel %vm413, %v354, 0
        %v1025 = vsel %vm413, %v355, 0
        %v1028 = vsel %vm413, %v356, 0
        %v1031 = vsel %vm413, %v357, 0
        %v1034 = vsel %vm413, %v358, 0
        %v1037 = vsel %vm413, %v359, 0
        %v1040 = vsel %vm413, %v360, 0
        %v1043 = vsel %vm413, %v361, 0
        %v1046 = vsel %vm413, %v362, 0
        %v1049 = vsel %vm413, %v363, 0
        %v1052 = vsel %vm413, %v364, 0
        %1054 = vmatprep.subr.mxu0 0.0
        %1055 = vmatpush1.xpose.msra.mxu0 %v1052
        %1056 = vmatprep.subr.mxu0 0.0
        %1057 = vmatpush1.xpose.msra.mxu0 %v1049
        %1058 = vmatprep.subr.mxu0 0.0
        %1059 = vmatpush1.xpose.msra.mxu0 %v1046
        %1060 = vmatprep.subr.mxu0 0.0
        %1061 = vmatpush1.xpose.msra.mxu0 %v1043
        %1062 = vmatprep.subr.mxu0 0.0
        %1063 = vmatpush1.xpose.msra.mxu0 %v1040
        %1064 = vmatprep.subr.mxu0 0.0
        %1065 = vmatpush1.xpose.msra.mxu0 %v1037
        %1066 = vmatprep.subr.mxu0 0.0
        %1067 = vmatpush1.xpose.msra.mxu0 %v1034
        %1068 = vmatprep.subr.mxu0 0.0
        %1069 = vmatpush1.xpose.msra.mxu0 %v1031
        %1070 = vmatprep.subr.mxu0 0.0
        %1071 = vmatpush1.xpose.msra.mxu0 %v1028
        %1072 = vmatprep.subr.mxu0 0.0
        %1073 = vmatpush1.xpose.msra.mxu0 %v1025
        %1074 = vmatprep.subr.mxu0 0.0
        %1075 = vmatpush1.xpose.msra.mxu0 %v1022
        %1076 = vmatprep.subr.mxu0 0.0
        %1077 = vmatpush1.xpose.msra.mxu0 %v1019
        %1078 = vmatprep.subr.mxu0 0.0
        %1079 = vmatpush1.xpose.msra.mxu0 %v1016
        %1080 = vmatprep.subr.mxu0 0.0
        %1081 = vmatpush1.xpose.msra.mxu0 %v1013
        %1082 = vmatprep.subr.mxu0 0.0
        %1083 = vmatpush1.xpose.msra.mxu0 %v1010
        %1084 = vmatprep.subr.mxu0 0.0
        %1085 = vmatpush1.xpose.msra.mxu0 %v1007
        %1086 = vmatprep.subr.mxu0 0.0
        %1087 = vmatpush2.xpose.msra.mxu0 0.0
        %1088 = vmatprep.subr.mxu0 0.0
        %1089 = vmatpush2.xpose.msra.mxu0 0.0
        %1090 = vmatprep.subr.mxu0 0.0
        %1091 = vmatpush2.xpose.msra.mxu0 0.0
        %1092 = vmatprep.subr.mxu0 0.0
        %1093 = vmatpush2.xpose.msra.mxu0 0.0
        %1094 = vmatprep.subr.mxu0 0.0
        %1095 = vmatpush2.xpose.msra.mxu0 0.0
        %1096 = vmatprep.subr.mxu0 0.0
        %1097 = vmatpush2.xpose.msra.mxu0 0.0
        %1098 = vmatprep.subr.mxu0 0.0
        %1099 = vmatpush2.xpose.msra.mxu0 0.0
        %1100 = vmatprep.subr.mxu0 0.0
        %1101 = vmatpush2.xpose.msra.mxu0 0.0
        %1102 = vmatprep.subr.mxu0 0.0
        %1103 = vmatpush2.xpose.msra.mxu0 0.0
        %1104 = vmatprep.subr.mxu0 0.0
        %1105 = vmatpush2.xpose.msra.mxu0 0.0
        %1106 = vmatprep.subr.mxu0 0.0
        %1107 = vmatpush2.xpose.msra.mxu0 0.0
        %1108 = vmatprep.subr.mxu0 0.0
        %1109 = vmatpush2.xpose.msra.mxu0 0.0
        %1110 = vmatprep.subr.mxu0 0.0
        %1111 = vmatpush2.xpose.msra.mxu0 0.0
        %1112 = vmatprep.subr.mxu0 0.0
        %1113 = vmatpush2.xpose.msra.mxu0 0.0
        %1114 = vmatprep.subr.mxu0 0.0
        %1115 = vmatpush2.xpose.msra.mxu0 0.0
        %1116 = vmatprep.subr.mxu0 0.0
        %1117 = vmatpush2.xpose.msra.mxu0 0.0
        %1118 = vmatprep.mubr.f32.mxu0 0.0
        %1119 = vmatmul.mubr.f32.gmra.mxu0 %v995
        %v1120 = vpop.f32.mrf.mxu0
        %v1121 = vadd.f32 0.0, %v1120
        %v1122 = vpop.f32.mrf.mxu0
        %1123 = vmatprep.mubr.f32.mxu0 0.0
        %1124 = vmatmul.mubr.f32.gmra.mxu0 %v998
        %v1125 = vpop.f32.mrf.mxu0
        %v1126 = vadd.f32 0.0, %v1125
        %v1127 = vpop.f32.mrf.mxu0
        %1128 = vmatprep.mubr.f32.mxu0 0.0
        %1129 = vmatmul.mubr.f32.gmra.mxu0 %v1001
        %v1130 = vpop.f32.mrf.mxu0
        %v1131 = vadd.f32 0.0, %v1130
        %v1132 = vpop.f32.mrf.mxu0
        %1133 = vmatprep.mubr.f32.mxu0 0.0
        %1134 = vmatmul.mubr.f32.gmra.mxu0 %v1004
        %v1135 = vpop.f32.mrf.mxu0
        %v1136 = vadd.f32 0.0, %v1135
        %v1137 = vpop.f32.mrf.mxu0
        %1138 = vdwg.mxu0
        %v1140 = vsel %vm413, %v273, 0
        %v1143 = vsel %vm413, %v274, 0
        %v1146 = vsel %vm413, %v275, 0
        %v1149 = vsel %vm413, %v276, 0
        %v1152 = vsel %vm413, %v365, 0
        %v1155 = vsel %vm413, %v366, 0
        %v1158 = vsel %vm413, %v367, 0
        %v1161 = vsel %vm413, %v368, 0
        %v1164 = vsel %vm413, %v369, 0
        %v1167 = vsel %vm413, %v370, 0
        %v1170 = vsel %vm413, %v371, 0
        %v1173 = vsel %vm413, %v372, 0
        %v1176 = vsel %vm413, %v373, 0
        %v1179 = vsel %vm413, %v374, 0
        %v1182 = vsel %vm413, %v375, 0
        %v1185 = vsel %vm413, %v376, 0
        %v1188 = vsel %vm413, %v377, 0
        %v1191 = vsel %vm413, %v378, 0
        %v1194 = vsel %vm413, %v379, 0
        %v1197 = vsel %vm413, %v380, 0
        %1199 = vmatprep.subr.mxu0 0.0
        %1200 = vmatpush1.xpose.msra.mxu0 %v1197
        %1201 = vmatprep.subr.mxu0 0.0
        %1202 = vmatpush1.xpose.msra.mxu0 %v1194
        %1203 = vmatprep.subr.mxu0 0.0
        %1204 = vmatpush1.xpose.msra.mxu0 %v1191
        %1205 = vmatprep.subr.mxu0 0.0
        %1206 = vmatpush1.xpose.msra.mxu0 %v1188
        %1207 = vmatprep.subr.mxu0 0.0
        %1208 = vmatpush1.xpose.msra.mxu0 %v1185
        %1209 = vmatprep.subr.mxu0 0.0
        %1210 = vmatpush1.xpose.msra.mxu0 %v1182
        %1211 = vmatprep.subr.mxu0 0.0
        %1212 = vmatpush1.xpose.msra.mxu0 %v1179
        %1213 = vmatprep.subr.mxu0 0.0
        %1214 = vmatpush1.xpose.msra.mxu0 %v1176
        %1215 = vmatprep.subr.mxu0 0.0
        %1216 = vmatpush1.xpose.msra.mxu0 %v1173
        %1217 = vmatprep.subr.mxu0 0.0
        %1218 = vmatpush1.xpose.msra.mxu0 %v1170
        %1219 = vmatprep.subr.mxu0 0.0
        %1220 = vmatpush1.xpose.msra.mxu0 %v1167
        %1221 = vmatprep.subr.mxu0 0.0
        %1222 = vmatpush1.xpose.msra.mxu0 %v1164
        %1223 = vmatprep.subr.mxu0 0.0
        %1224 = vmatpush1.xpose.msra.mxu0 %v1161
        %1225 = vmatprep.subr.mxu0 0.0
        %1226 = vmatpush1.xpose.msra.mxu0 %v1158
        %1227 = vmatprep.subr.mxu0 0.0
        %1228 = vmatpush1.xpose.msra.mxu0 %v1155
        %1229 = vmatprep.subr.mxu0 0.0
        %1230 = vmatpush1.xpose.msra.mxu0 %v1152
        %1231 = vmatprep.subr.mxu0 0.0
        %1232 = vmatpush2.xpose.msra.mxu0 0.0
        %1233 = vmatprep.subr.mxu0 0.0
        %1234 = vmatpush2.xpose.msra.mxu0 0.0
        %1235 = vmatprep.subr.mxu0 0.0
        %1236 = vmatpush2.xpose.msra.mxu0 0.0
        %1237 = vmatprep.subr.mxu0 0.0
        %1238 = vmatpush2.xpose.msra.mxu0 0.0
        %1239 = vmatprep.subr.mxu0 0.0
        %1240 = vmatpush2.xpose.msra.mxu0 0.0
        %1241 = vmatprep.subr.mxu0 0.0
        %1242 = vmatpush2.xpose.msra.mxu0 0.0
        %1243 = vmatprep.subr.mxu0 0.0
        %1244 = vmatpush2.xpose.msra.mxu0 0.0
        %1245 = vmatprep.subr.mxu0 0.0
        %1246 = vmatpush2.xpose.msra.mxu0 0.0
        %1247 = vmatprep.subr.mxu0 0.0
        %1248 = vmatpush2.xpose.msra.mxu0 0.0
        %1249 = vmatprep.subr.mxu0 0.0
        %1250 = vmatpush2.xpose.msra.mxu0 0.0
        %1251 = vmatprep.subr.mxu0 0.0
        %1252 = vmatpush2.xpose.msra.mxu0 0.0
        %1253 = vmatprep.subr.mxu0 0.0
        %1254 = vmatpush2.xpose.msra.mxu0 0.0
        %1255 = vmatprep.subr.mxu0 0.0
        %1256 = vmatpush2.xpose.msra.mxu0 0.0
        %1257 = vmatprep.subr.mxu0 0.0
        %1258 = vmatpush2.xpose.msra.mxu0 0.0
        %1259 = vmatprep.subr.mxu0 0.0
        %1260 = vmatpush2.xpose.msra.mxu0 0.0
        %1261 = vmatprep.subr.mxu0 0.0
        %1262 = vmatpush2.xpose.msra.mxu0 0.0
        %1263 = vmatprep.mubr.f32.mxu0 0.0
        %1264 = vmatmul.mubr.f32.gmra.mxu0 %v1140
        %v1265 = vpop.f32.mrf.mxu0
        %v1266 = vadd.f32 0.0, %v1265
        %v1267 = vpop.f32.mrf.mxu0
        %1268 = vmatprep.mubr.f32.mxu0 0.0
        %1269 = vmatmul.mubr.f32.gmra.mxu0 %v1143
        %v1270 = vpop.f32.mrf.mxu0
        %v1271 = vadd.f32 0.0, %v1270
        %v1272 = vpop.f32.mrf.mxu0
        %1273 = vmatprep.mubr.f32.mxu0 0.0
        %1274 = vmatmul.mubr.f32.gmra.mxu0 %v1146
        %v1275 = vpop.f32.mrf.mxu0
        %v1276 = vadd.f32 0.0, %v1275
        %v1277 = vpop.f32.mrf.mxu0
        %1278 = vmatprep.mubr.f32.mxu0 0.0
        %1279 = vmatmul.mubr.f32.gmra.mxu0 %v1149
        %v1280 = vpop.f32.mrf.mxu0
        %v1281 = vadd.f32 0.0, %v1280
        %v1282 = vpop.f32.mrf.mxu0
        %1283 = vdwg.mxu0
        %v1285 = vsel %vm413, %v277, 0
        %v1288 = vsel %vm413, %v278, 0
        %v1291 = vsel %vm413, %v279, 0
        %v1294 = vsel %vm413, %v280, 0
        %v1297 = vsel %vm413, %v381, 0
        %v1300 = vsel %vm413, %v382, 0
        %v1303 = vsel %vm413, %v383, 0
        %v1306 = vsel %vm413, %v384, 0
        %v1309 = vsel %vm413, %v385, 0
        %v1312 = vsel %vm413, %v386, 0
        %v1315 = vsel %vm413, %v387, 0
        %v1318 = vsel %vm413, %v388, 0
        %v1321 = vsel %vm413, %v389, 0
        %v1324 = vsel %vm413, %v390, 0
        %v1327 = vsel %vm413, %v391, 0
        %v1330 = vsel %vm413, %v392, 0
        %v1333 = vsel %vm413, %v393, 0
        %v1336 = vsel %vm413, %v394, 0
        %v1339 = vsel %vm413, %v395, 0
        %v1342 = vsel %vm413, %v396, 0
        %1344 = vmatprep.subr.mxu0 0.0
        %1345 = vmatpush1.xpose.msra.mxu0 %v1342
        %1346 = vmatprep.subr.mxu0 0.0
        %1347 = vmatpush1.xpose.msra.mxu0 %v1339
        %1348 = vmatprep.subr.mxu0 0.0
        %1349 = vmatpush1.xpose.msra.mxu0 %v1336
        %1350 = vmatprep.subr.mxu0 0.0
        %1351 = vmatpush1.xpose.msra.mxu0 %v1333
        %1352 = vmatprep.subr.mxu0 0.0
        %1353 = vmatpush1.xpose.msra.mxu0 %v1330
        %1354 = vmatprep.subr.mxu0 0.0
        %1355 = vmatpush1.xpose.msra.mxu0 %v1327
        %1356 = vmatprep.subr.mxu0 0.0
        %1357 = vmatpush1.xpose.msra.mxu0 %v1324
        %1358 = vmatprep.subr.mxu0 0.0
        %1359 = vmatpush1.xpose.msra.mxu0 %v1321
        %1360 = vmatprep.subr.mxu0 0.0
        %1361 = vmatpush1.xpose.msra.mxu0 %v1318
        %1362 = vmatprep.subr.mxu0 0.0
        %1363 = vmatpush1.xpose.msra.mxu0 %v1315
        %1364 = vmatprep.subr.mxu0 0.0
        %1365 = vmatpush1.xpose.msra.mxu0 %v1312
        %1366 = vmatprep.subr.mxu0 0.0
        %1367 = vmatpush1.xpose.msra.mxu0 %v1309
        %1368 = vmatprep.subr.mxu0 0.0
        %1369 = vmatpush1.xpose.msra.mxu0 %v1306
        %1370 = vmatprep.subr.mxu0 0.0
        %1371 = vmatpush1.xpose.msra.mxu0 %v1303
        %1372 = vmatprep.subr.mxu0 0.0
        %1373 = vmatpush1.xpose.msra.mxu0 %v1300
        %1374 = vmatprep.subr.mxu0 0.0
        %1375 = vmatpush1.xpose.msra.mxu0 %v1297
        %1376 = vmatprep.subr.mxu0 0.0
        %1377 = vmatpush2.xpose.msra.mxu0 0.0
        %1378 = vmatprep.subr.mxu0 0.0
        %1379 = vmatpush2.xpose.msra.mxu0 0.0
        %1380 = vmatprep.subr.mxu0 0.0
        %1381 = vmatpush2.xpose.msra.mxu0 0.0
        %1382 = vmatprep.subr.mxu0 0.0
        %1383 = vmatpush2.xpose.msra.mxu0 0.0
        %1384 = vmatprep.subr.mxu0 0.0
        %1385 = vmatpush2.xpose.msra.mxu0 0.0
        %1386 = vmatprep.subr.mxu0 0.0
        %1387 = vmatpush2.xpose.msra.mxu0 0.0
        %1388 = vmatprep.subr.mxu0 0.0
        %1389 = vmatpush2.xpose.msra.mxu0 0.0
        %1390 = vmatprep.subr.mxu0 0.0
        %1391 = vmatpush2.xpose.msra.mxu0 0.0
        %1392 = vmatprep.subr.mxu0 0.0
        %1393 = vmatpush2.xpose.msra.mxu0 0.0
        %1394 = vmatprep.subr.mxu0 0.0
        %1395 = vmatpush2.xpose.msra.mxu0 0.0
        %1396 = vmatprep.subr.mxu0 0.0
        %1397 = vmatpush2.xpose.msra.mxu0 0.0
        %1398 = vmatprep.subr.mxu0 0.0
        %1399 = vmatpush2.xpose.msra.mxu0 0.0
        %1400 = vmatprep.subr.mxu0 0.0
        %1401 = vmatpush2.xpose.msra.mxu0 0.0
        %1402 = vmatprep.subr.mxu0 0.0
        %1403 = vmatpush2.xpose.msra.mxu0 0.0
        %1404 = vmatprep.subr.mxu0 0.0
        %1405 = vmatpush2.xpose.msra.mxu0 0.0
        %1406 = vmatprep.subr.mxu0 0.0
        %1407 = vmatpush2.xpose.msra.mxu0 0.0
        %1408 = vmatprep.mubr.f32.mxu0 0.0
        %1409 = vmatmul.mubr.f32.gmra.mxu0 %v1285
        %v1410 = vpop.f32.mrf.mxu0
        %v1411 = vadd.f32 0.0, %v1410
        %v1412 = vpop.f32.mrf.mxu0
        %1413 = vmatprep.mubr.f32.mxu0 0.0
        %1414 = vmatmul.mubr.f32.gmra.mxu0 %v1288
        %v1415 = vpop.f32.mrf.mxu0
        %v1416 = vadd.f32 0.0, %v1415
        %v1417 = vpop.f32.mrf.mxu0
        %1418 = vmatprep.mubr.f32.mxu0 0.0
        %1419 = vmatmul.mubr.f32.gmra.mxu0 %v1291
        %v1420 = vpop.f32.mrf.mxu0
        %v1421 = vadd.f32 0.0, %v1420
        %v1422 = vpop.f32.mrf.mxu0
        %1423 = vmatprep.mubr.f32.mxu0 0.0
        %1424 = vmatmul.mubr.f32.gmra.mxu0 %v1294
        %v1425 = vpop.f32.mrf.mxu0
        %v1426 = vadd.f32 0.0, %v1425
        %v1427 = vpop.f32.mrf.mxu0
        %1428 = vdwg.mxu0
        %v1430 = vsel %vm413, %v281, 0
        %v1433 = vsel %vm413, %v282, 0
        %v1436 = vsel %vm413, %v283, 0
        %v1439 = vsel %vm413, %v284, 0
        %v1442 = vsel %vm413, %v397, 0
        %v1445 = vsel %vm413, %v398, 0
        %v1448 = vsel %vm413, %v399, 0
        %v1451 = vsel %vm413, %v400, 0
        %v1454 = vsel %vm413, %v401, 0
        %v1457 = vsel %vm413, %v402, 0
        %v1460 = vsel %vm413, %v403, 0
        %v1463 = vsel %vm413, %v404, 0
        %v1466 = vsel %vm413, %v405, 0
        %v1469 = vsel %vm413, %v406, 0
        %v1472 = vsel %vm413, %v407, 0
        %v1475 = vsel %vm413, %v408, 0
        %v1478 = vsel %vm413, %v409, 0
        %v1481 = vsel %vm413, %v410, 0
        %v1484 = vsel %vm413, %v411, 0
        %v1487 = vsel %vm413, %v412, 0
        %1489 = vmatprep.subr.mxu0 0.0
        %1490 = vmatpush1.xpose.msra.mxu0 %v1487
        %1491 = vmatprep.subr.mxu0 0.0
        %1492 = vmatpush1.xpose.msra.mxu0 %v1484
        %1493 = vmatprep.subr.mxu0 0.0
        %1494 = vmatpush1.xpose.msra.mxu0 %v1481
        %1495 = vmatprep.subr.mxu0 0.0
        %1496 = vmatpush1.xpose.msra.mxu0 %v1478
        %1497 = vmatprep.subr.mxu0 0.0
        %1498 = vmatpush1.xpose.msra.mxu0 %v1475
        %1499 = vmatprep.subr.mxu0 0.0
        %1500 = vmatpush1.xpose.msra.mxu0 %v1472
        %1501 = vmatprep.subr.mxu0 0.0
        %1502 = vmatpush1.xpose.msra.mxu0 %v1469
        %1503 = vmatprep.subr.mxu0 0.0
        %1504 = vmatpush1.xpose.msra.mxu0 %v1466
        %1505 = vmatprep.subr.mxu0 0.0
        %1506 = vmatpush1.xpose.msra.mxu0 %v1463
        %1507 = vmatprep.subr.mxu0 0.0
        %1508 = vmatpush1.xpose.msra.mxu0 %v1460
        %1509 = vmatprep.subr.mxu0 0.0
        %1510 = vmatpush1.xpose.msra.mxu0 %v1457
        %1511 = vmatprep.subr.mxu0 0.0
        %1512 = vmatpush1.xpose.msra.mxu0 %v1454
        %1513 = vmatprep.subr.mxu0 0.0
        %1514 = vmatpush1.xpose.msra.mxu0 %v1451
        %1515 = vmatprep.subr.mxu0 0.0
        %1516 = vmatpush1.xpose.msra.mxu0 %v1448
        %1517 = vmatprep.subr.mxu0 0.0
        %1518 = vmatpush1.xpose.msra.mxu0 %v1445
        %1519 = vmatprep.subr.mxu0 0.0
        %1520 = vmatpush1.xpose.msra.mxu0 %v1442
        %1521 = vmatprep.subr.mxu0 0.0
        %1522 = vmatpush2.xpose.msra.mxu0 0.0
        %1523 = vmatprep.subr.mxu0 0.0
        %1524 = vmatpush2.xpose.msra.mxu0 0.0
        %1525 = vmatprep.subr.mxu0 0.0
        %1526 = vmatpush2.xpose.msra.mxu0 0.0
        %1527 = vmatprep.subr.mxu0 0.0
        %1528 = vmatpush2.xpose.msra.mxu0 0.0
        %1529 = vmatprep.subr.mxu0 0.0
        %1530 = vmatpush2.xpose.msra.mxu0 0.0
        %1531 = vmatprep.subr.mxu0 0.0
        %1532 = vmatpush2.xpose.msra.mxu0 0.0
        %1533 = vmatprep.subr.mxu0 0.0
        %1534 = vmatpush2.xpose.msra.mxu0 0.0
        %1535 = vmatprep.subr.mxu0 0.0
        %1536 = vmatpush2.xpose.msra.mxu0 0.0
        %1537 = vmatprep.subr.mxu0 0.0
        %1538 = vmatpush2.xpose.msra.mxu0 0.0
        %1539 = vmatprep.subr.mxu0 0.0
        %1540 = vmatpush2.xpose.msra.mxu0 0.0
        %1541 = vmatprep.subr.mxu0 0.0
        %1542 = vmatpush2.xpose.msra.mxu0 0.0
        %1543 = vmatprep.subr.mxu0 0.0
        %1544 = vmatpush2.xpose.msra.mxu0 0.0
        %1545 = vmatprep.subr.mxu0 0.0
        %1546 = vmatpush2.xpose.msra.mxu0 0.0
        %1547 = vmatprep.subr.mxu0 0.0
        %1548 = vmatpush2.xpose.msra.mxu0 0.0
        %1549 = vmatprep.subr.mxu0 0.0
        %1550 = vmatpush2.xpose.msra.mxu0 0.0
        %1551 = vmatprep.subr.mxu0 0.0
        %1552 = vmatpush2.xpose.msra.mxu0 0.0
        %1553 = vmatprep.mubr.f32.mxu0 0.0
        %1554 = vmatmul.mubr.f32.gmra.mxu0 %v1430
        %v1555 = vpop.f32.mrf.mxu0
        %v1556 = vadd.f32 0.0, %v1555
        %v1557 = vpop.f32.mrf.mxu0
        %1558 = vmatprep.mubr.f32.mxu0 0.0
        %1559 = vmatmul.mubr.f32.gmra.mxu0 %v1433
        %v1560 = vpop.f32.mrf.mxu0
        %v1561 = vadd.f32 0.0, %v1560
        %v1562 = vpop.f32.mrf.mxu0
        %1563 = vmatprep.mubr.f32.mxu0 0.0
        %1564 = vmatmul.mubr.f32.gmra.mxu0 %v1436
        %v1565 = vpop.f32.mrf.mxu0
        %v1566 = vadd.f32 0.0, %v1565
        %v1567 = vpop.f32.mrf.mxu0
        %1568 = vmatprep.mubr.f32.mxu0 0.0
        %1569 = vmatmul.mubr.f32.gmra.mxu0 %v1439
        %v1570 = vpop.f32.mrf.mxu0
        %v1571 = vadd.f32 0.0, %v1570
        %v1572 = vpop.f32.mrf.mxu0
        %1573 = vdwg.mxu0
        %1574 = vst [vmem:[%s250] sm:$0xff] %v541
        %1575 = vst [vmem:[%s250 + $0x8] sm:$0xff] %v546
        %1576 = vst [vmem:[%s250 + $0x10] sm:$0xff] %v551
        %1577 = vst [vmem:[%s250 + $0x18] sm:$0xff] %v556
        %1578 = vst [vmem:[%s250 + $0x20] sm:$0xff] %v686
        %1579 = vst [vmem:[%s250 + $0x28] sm:$0xff] %v691
        %1580 = vst [vmem:[%s250 + $0x30] sm:$0xff] %v696
        %1581 = vst [vmem:[%s250 + $0x38] sm:$0xff] %v701
        %1582 = vst [vmem:[%s250 + $0x40] sm:$0xff] %v831
        %1583 = vst [vmem:[%s250 + $0x48] sm:$0xff] %v836
        %1584 = vst [vmem:[%s250 + $0x50] sm:$0xff] %v841
        %1585 = vst [vmem:[%s250 + $0x58] sm:$0xff] %v846
        %1586 = vst [vmem:[%s250 + $0x60] sm:$0xff] %v976
        %1587 = vst [vmem:[%s250 + $0x68] sm:$0xff] %v981
        %1588 = vst [vmem:[%s250 + $0x70] sm:$0xff] %v986
        %1589 = vst [vmem:[%s250 + $0x78] sm:$0xff] %v991
        %1590 = vst [vmem:[%s250 + $0x80] sm:$0xff] %v1121
        %1591 = vst [vmem:[%s250 + $0x88] sm:$0xff] %v1126
        %1592 = vst [vmem:[%s250 + $0x90] sm:$0xff] %v1131
        %1593 = vst [vmem:[%s250 + $0x98] sm:$0xff] %v1136
        %1594 = vst [vmem:[%s250 + $0xa0] sm:$0xff] %v1266
        %1595 = vst [vmem:[%s250 + $0xa8] sm:$0xff] %v1271
        %1596 = vst [vmem:[%s250 + $0xb0] sm:$0xff] %v1276
        %1597 = vst [vmem:[%s250 + $0xb8] sm:$0xff] %v1281
        %1598 = vst [vmem:[%s250 + $0xc0] sm:$0xff] %v1411
        %1599 = vst [vmem:[%s250 + $0xc8] sm:$0xff] %v1416
        %1600 = vst [vmem:[%s250 + $0xd0] sm:$0xff] %v1421
        %1601 = vst [vmem:[%s250 + $0xd8] sm:$0xff] %v1426
        %1602 = vst [vmem:[%s250 + $0xe0] sm:$0xff] %v1556
        %1603 = vst [vmem:[%s250 + $0xe8] sm:$0xff] %v1561
        %1604 = vst [vmem:[%s250 + $0xf0] sm:$0xff] %v1566
        %1605 = vst [vmem:[%s250 + $0xf8] sm:$0xff] %v1571
        %s1606 = smul.u32 8, %s22
        %s1607 = smul.u32 2, %s21
        %p1608 = scmp.lt.s32.totalorder %s1606, 23
        %s1609 = scalar_select %p1608, %s1606, 23
        %p1610 = scmp.lt.s32.totalorder %s1607, 1
        %s1611 = scalar_select %p1610, %s1607, 1
        %p1612 = scmp.lt.s32.totalorder %s23, 0
        %s1613 = scalar_select %p1612, %s23, 0
        %s1614 = sadd.s32 %s1613, %s1611
        %s1615 = smul.addr %s1609, 4
        %s1616 = sadd.s32 %s1614, %s1615
        %s1617 = smul.addr %s1616, 8
        %s1618 = scalar_lea.vmem %s2, %s1617
        // Predicated region
        $region33: #{sht.3} parent=27 // pred_check
          %p1619 = pneg %p113
        $region34: #{sht.3} parent=27 // pred_check_branch
          %1621 = sbr.rel (%p1619) target = $region36
        $region35: #{sht.3} parent=27 // pred_region
          %s1622 = smul.u32 8, %s22
          %s1623 = smul.u32 2, %s21
        $region36: #{sht.3} parent=27 // pred_fallthru
          _
      $region28: #{sht.3} parent=5 // pred_fallthru
        _
      %p1624 = scmp.le.s32.totalorder 2, %s11
      // Predicated region
      $region37: #{sht.3} parent=5 // pred_check
        %p1625 = pneg %p1624
      $region38: #{sht.3} parent=5 // pred_check_branch
        %1627 = sbr.rel (%p1625) target = $region40
      $region39: #{sht.3} parent=5 // pred_region
        %s1628 = ssub.s32 %s11, 2
        // Predicated region
        $region41: #{sht.3} parent=39 // pred_check
          %p1629 = pneg %p119
        $region42: #{sht.3} parent=39 // pred_check_branch
          %1631 = sbr.rel (%p1629) target = $region44
        $region43: #{sht.3} parent=39 // pred_region
          %s1632 = smul.u32 8, %s25
          %s1633 = smul.u32 2, %s24
          %p1634 = scmp.lt.s32.totalorder %s1632, 23
          %s1635 = scalar_select %p1634, %s1632, 23
          %p1636 = scmp.lt.s32.totalorder %s1633, 1
          %s1637 = scalar_select %p1636, %s1633, 1
          %p1638 = scmp.lt.s32.totalorder %s26, 0
          %s1639 = scalar_select %p1638, %s26, 0
          %s1640 = sadd.s32 %s1639, %s1637
          %s1641 = smul.addr %s1635, 4
          %s1642 = sadd.s32 %s1640, %s1641
          %s1643 = smul.addr %s1642, 8
          %s1644 = scalar_lea.vmem %s2, %s1643
        $region44: #{sht.3} parent=39 // pred_fallthru
          _
      $region40: #{sht.3} parent=5 // pred_fallthru
        _
    $region6: #{sht.3} parent=1 // loop_footer
      %s15 = sadd.s32 1, %s11
    $region7: #{sht.3} parent=1 // loop_footer_branch
      %10 = sbr.rel target = $region3
    $region8: #{sht.3} parent=1 // loop_exit
      _
    %1645 = vsyncpa [#allocation3], 1
    %s1646 = scalar_lea.sflag [#allocation3], 1
    %1647 = vsyncpa %s1646, 1

</llo_original>
